<compile_context>
chip_gen: v7x
topology: tpu7x:2x2x1
jax: 0.10.0
libtpu: 0.0.40
codegen_flags: <defaults>
</compile_context>

<pallas_src>
import math
from functools import partial

import jax
import jax.numpy as jnp
from jax import lax
from jax.experimental import pallas as pl
from jax.experimental.pallas import tpu as pltpu


# -----------------------------------------------------------------------------
# helpers
# -----------------------------------------------------------------------------
def _full_spec(shape):
    nd = len(shape)
    return pl.BlockSpec(tuple(shape), lambda i, _nd=nd: (0,) * _nd)


def _gelu(x):
    # tanh-approximate GELU (== torch F.gelu(approximate='tanh')); keeps the
    # erf polynomial off the VALU — tanh runs on the otherwise-idle EUP slot.
    c = 0.7978845608028654  # sqrt(2/pi)
    return 0.5 * x * (1.0 + jnp.tanh(c * (x + 0.044715 * (x * x * x))))


def _layernorm(v, g, b, eps=1e-5):
    mu = jnp.mean(v, axis=-1, keepdims=True)
    vc = v - mu
    var = jnp.mean(vc * vc, axis=-1, keepdims=True)
    return vc * lax.rsqrt(var + eps) * g + b


# -----------------------------------------------------------------------------
# the single fused kernel
# -----------------------------------------------------------------------------
def _fused_forward_kernel(x_ref, pe_ref, wqkv_ref, bqkv_ref, wo_ref, bo_ref,
                          wff_ref, bff_ref, g1_ref, b1_ref, g2_ref, b2_ref,
                          mh_ref, mht_ref, sel_ref, wconv_ref, bconv_ref,
                          wfc_ref, bfc_ref, o_ref,
                          *, B, L, D, H, K, C, NCLS):
    f32 = jnp.float32
    bf16 = jnp.bfloat16
    T = L // K
    BT = B * T

    # ---- PositionalEncoding (dropout p=0): u[b, l, :] = x[b, l, :] + pe[l, :]
    u = (x_ref[...].reshape(B, L, D) + pe_ref[...][None, :, :]).reshape(B * L, D)
    u_bf = u.astype(bf16)

    # ---- QQ/KK/VV composed with MHA.in_proj as ONE bf16 MXU GEMM.
    # The 1/sqrt(head_dim) query scaling is folded into the packed weights.
    qkv = jnp.dot(u_bf, wqkv_ref[...], preferred_element_type=f32) + bqkv_ref[...]
    qp = qkv[:, :D]                                                  # [B*L, D]
    kp = qkv[:, D:2 * D]
    vp = qkv[:, 2 * D:]

    # ---- nn.MultiheadAttention with batch_first=False on [B, L, D] inputs:
    # the softmax axis is B, the MHA "batch" is L*heads.  All (i, j) pairs are
    # batched into single slabs; per-head reduce/broadcast are MXU matmuls
    # against exact 0/1 bf16 head masks mh [D, H] / mht [H, D].
    qk = qp.reshape(B, 1, L, D) * kp.reshape(1, B, L, D)             # [B,B,L,D]
    s = jnp.dot(qk.reshape(B * B * L, D).astype(bf16), mh_ref[...],
                preferred_element_type=f32).reshape(B, B, L, H)      # scores
    m = jnp.max(s, axis=1, keepdims=True)                            # over j
    e = jnp.exp(s - m)
    den = jnp.sum(e, axis=1, keepdims=True)
    p = e * pl.reciprocal(den, approx=True)                          # [B,B,L,H]
    pd = jnp.dot(p.reshape(B * B * L, H).astype(bf16), mht_ref[...],
                 preferred_element_type=f32).reshape(B, B, L, D)
    ctx = jnp.sum(pd * vp.reshape(1, B, L, D), axis=1)               # [B, L, D]
    attn = jnp.dot(ctx.reshape(B * L, D).astype(bf16), wo_ref[...],
                   preferred_element_type=f32) + bo_ref[...]

    # ---- norm1(u + attn) -> ff1 -> act -> ff2 -> norm2(u + .) ---------------
    h = _layernorm(u + attn, g1_ref[...], b1_ref[...])

    def lin(v, idx, act):
        y = jnp.dot(v.astype(bf16), wff_ref[idx],
                    preferred_element_type=f32) + bff_ref[idx]
        return _gelu(y) if act else y

    h = lin(h, 0, True)       # ff1.lin1 + GELU
    h = lin(h, 1, True)       # ff1.lin2, then self.act (GELU)
    h = lin(h, 2, True)       # ff2.lin1 + GELU
    h = lin(h, 3, False)      # ff2.lin2
    z = _layernorm(u + h, g2_ref[...], b2_ref[...])                  # [B*L, D]

    # ---- SepChannels1DConv + softmax + fully_connected, dense in VMEM -------
    # TODO(synk): the PyTorch SepChannels1DConv.forward as written is not
    # executable (torch.stack on a Tensor, x.size(3) on a 3-D tensor, conv1D
    # never applied); the evident intent matching fully_connected's D*C*T
    # input is implemented: per-input-channel Conv1d(1, C, K, stride=K),
    # softmax over the D input channels, (d, c, t)-ordered flatten into FC.
    # Conv taps gathered with ONE 0/1 selection matmul on the MXU (no strided
    # sublane reads, no VMEM scratch): taps[(j, b, t), :] = z[b*L + t*K + j].
    taps = jnp.dot(sel_ref[...], z.astype(bf16),
                   preferred_element_type=f32).reshape(K, 1, BT, D)
    conv = jnp.sum(wconv_ref[...] * taps, axis=0) + bconv_ref[...]   # [C,BT,D]
    cmx = jnp.max(conv, axis=-1, keepdims=True)                      # softmax d
    cex = jnp.exp(conv - cmx)
    prob = cex * pl.reciprocal(jnp.sum(cex, axis=-1, keepdims=True),
                               approx=True)                          # [C,BT,D]

    # fully_connected: wfc pre-packed as [B, NCLS, C, BT, D] with rows of
    # foreign batches zeroed -> one broadcast multiply + three single-axis
    # reduces produce a lane-major [B, NCLS] block directly.
    prod = prob[None, None] * wfc_ref[...]                           # [B,N,C,BT,D]
    red = jnp.sum(prod, axis=2)                                      # over C
    red = jnp.sum(red, axis=3)                                       # over D
    logits = jnp.sum(red, axis=2) + bfc_ref[...]                     # [B, NCLS]
    o_ref[...] = logits.astype(o_ref.dtype)


# -----------------------------------------------------------------------------
# parameter init (deterministic, synthetic — shapes from the module __init__)
# -----------------------------------------------------------------------------
def _linear_init(key, out_f, in_f):
    k1, k2 = jax.random.split(key)
    bound = 1.0 / math.sqrt(in_f)
    w = jax.random.uniform(k1, (out_f, in_f), jnp.float32, -bound, bound)
    b = jax.random.uniform(k2, (out_f,), jnp.float32, -bound, bound)
    return w, b


def init_params(key, D, n_classes, L, ksize, heads, C):
    T = L // ksize
    keys = jax.random.split(key, 16)
    p = {}
    p["Wq"], p["bq"] = _linear_init(keys[0], D, D)             # QQ
    p["Wk"], p["bk"] = _linear_init(keys[1], D, D)             # KK
    p["Wv"], p["bv"] = _linear_init(keys[2], D, D)             # VV
    xb = math.sqrt(6.0 / (2 * D))
    p["in_proj_w"] = jax.random.uniform(keys[3], (3 * D, D), jnp.float32, -xb, xb)
    p["in_proj_b"] = jnp.zeros((3 * D,), jnp.float32)
    p["Wo"], p["bo"] = _linear_init(keys[4], D, D)             # MHA out_proj
    p["W11"], p["b11"] = _linear_init(keys[5], D, D)           # ff1.lin1
    p["W12"], p["b12"] = _linear_init(keys[6], D, D)           # ff1.lin2
    p["W21"], p["b21"] = _linear_init(keys[7], D, D)           # ff2.lin1
    p["W22"], p["b22"] = _linear_init(keys[8], D, D)           # ff2.lin2
    p["g1"], p["b1"] = jnp.ones((1, D), jnp.float32), jnp.zeros((1, D), jnp.float32)
    p["g2"], p["b2"] = jnp.ones((1, D), jnp.float32), jnp.zeros((1, D), jnp.float32)
    cb = 1.0 / math.sqrt(ksize)
    p["conv_w"] = jax.random.uniform(keys[9], (D, C, ksize), jnp.float32, -cb, cb)
    p["conv_b"] = jax.random.uniform(keys[10], (D, C), jnp.float32, -cb, cb)
    p["Wfc"], p["bfc"] = _linear_init(keys[11], n_classes, D * C * T)
    # PositionalEncoding buffer pe[l, d]
    pos = jnp.arange(L, dtype=jnp.float32)[:, None]
    div = jnp.exp(jnp.arange(0, D, 2, dtype=jnp.float32) * (-math.log(10000.0) / D))
    pe = jnp.zeros((L, D), jnp.float32)
    pe = pe.at[:, 0::2].set(jnp.sin(pos * div))
    pe = pe.at[:, 1::2].set(jnp.cos(pos * div))
    p["pe"] = pe
    return p


def pack_params(p, *, B, L, D, heads, ksize, C, n_classes):
    """One-time packing: fold QQ/KK/VV into MHA.in_proj (with the query scale),
    pre-transpose every GEMM weight to bf16 [in, out], build exact 0/1 bf16
    head masks and the conv tap-selection matrix, and pre-permute conv / FC
    weights into the dense layouts the fused kernel consumes."""
    H, K, T = heads, ksize, L // ksize
    BT = B * T
    hd = D // H
    bf16 = jnp.bfloat16

    def composed(wx, bx, wi, bi):
        # Linear(wx, bx) followed by in_proj slice (wi, bi) as one [in, out] mat
        return jnp.transpose(wi @ wx), wi @ bx + bi

    Wi, bi = p["in_proj_w"], p["in_proj_b"]
    wq, bq = composed(p["Wq"], p["bq"], Wi[:D], bi[:D])
    wk, bk = composed(p["Wk"], p["bk"], Wi[D:2 * D], bi[D:2 * D])
    wv, bv = composed(p["Wv"], p["bv"], Wi[2 * D:], bi[2 * D:])
    scale = 1.0 / math.sqrt(hd)                   # MHA query scaling, folded in
    wqkv = jnp.concatenate([wq * scale, wk, wv], axis=1)             # [D, 3D]
    bqkv = jnp.concatenate([bq * scale, bk, bv])[None, :]            # [1, 3D]

    same_head = (jnp.arange(D)[:, None] // hd == jnp.arange(H)[None, :])
    mh = same_head.astype(bf16)                                      # [D, H]
    mht = jnp.transpose(same_head).astype(bf16)                      # [H, D]

    # 0/1 tap-selection matrix: row (j, b, t) picks column b*L + t*K + j.
    jj, bb, tt = jnp.meshgrid(jnp.arange(K), jnp.arange(B), jnp.arange(T),
                              indexing="ij")
    rows = (jj * BT + bb * T + tt).reshape(-1)
    cols = (bb * L + tt * K + jj).reshape(-1)
    sel = jnp.zeros((K * BT, B * L), jnp.float32).at[rows, cols].set(1.0)

    # fully_connected weight [N, D*C*T], features flattened in (d, c, t) order,
    # re-laid out to [B, NCLS, C, BT, D] with foreign-batch rows zeroed.
    wfc_p = jnp.transpose(p["Wfc"].reshape(n_classes, D, C, T), (0, 2, 3, 1))
    wfc_bt = jnp.tile(wfc_p, (1, 1, B, 1))                           # [N,C,BT,D]
    bmask = (jnp.arange(BT)[None, :] // T == jnp.arange(B)[:, None]).astype(
        jnp.float32)                                                 # [B, BT]
    wfc_full = wfc_bt[None, ...] * bmask[:, None, None, :, None]     # [B,N,C,BT,D]

    return {
        "pe": p["pe"],                                               # [L, D]
        "wqkv": wqkv.astype(bf16),                                   # [D, 3D]
        "bqkv": bqkv,                                                # [1, 3D]
        "wo": jnp.transpose(p["Wo"]).astype(bf16),                   # [D, D]
        "bo": p["bo"][None, :],                                      # [1, D]
        "wff": jnp.stack([jnp.transpose(p["W11"]), jnp.transpose(p["W12"]),
                          jnp.transpose(p["W21"]),
                          jnp.transpose(p["W22"])]).astype(bf16),    # [4, D, D]
        "bff": jnp.stack([p["b11"], p["b12"], p["b21"], p["b22"]])[:, None, :],
        "g1": p["g1"], "b1": p["b1"], "g2": p["g2"], "b2": p["b2"],
        "mh": mh, "mht": mht,
        "sel": sel.astype(bf16),                                     # [K*BT, B*L]
        # Conv1d_d.weight[c, 0, j] == conv_w[d, c, j]  ->  [K, C, 1, D]
        "wconv": jnp.transpose(p["conv_w"], (2, 1, 0))[:, :, None, :],
        # Conv1d_d.bias[c]         == conv_b[d, c]     ->  [C, 1, D]
        "bconv": jnp.transpose(p["conv_b"])[:, None, :],
        "wfc": wfc_full,                                             # [B,N,C,BT,D]
        "bfc": p["bfc"][None, :],                                    # [1, NCLS]
    }


# -----------------------------------------------------------------------------
# forward = TransformerWithSepChannels1DConv.forward (dropout p=0 -> identity)
# -----------------------------------------------------------------------------
def forward(packed, x, *, heads, ksize, conv_out_channels, n_classes):
    B, L, D = x.shape
    K, C, H = ksize, conv_out_channels, heads
    T = L // K
    assert L % K == 0 and D % H == 0
    # Alignment assumptions used by the in-kernel reshapes (toy shapes satisfy).
    assert L % 8 == 0 and (B * T) % 8 == 0

    args = [x.reshape(B * L, D), packed["pe"], packed["wqkv"], packed["bqkv"],
            packed["wo"], packed["bo"], packed["wff"], packed["bff"],
            packed["g1"], packed["b1"], packed["g2"], packed["b2"],
            packed["mh"], packed["mht"], packed["sel"], packed["wconv"],
            packed["bconv"], packed["wfc"], packed["bfc"]]
    out_shape = jax.ShapeDtypeStruct((B, n_classes), jnp.float32)
    kern = partial(_fused_forward_kernel, B=B, L=L, D=D, H=H, K=K, C=C,
                   NCLS=n_classes)
    return pl.pallas_call(
        kern,
        grid=(1,),                 # whole forward is one VMEM-resident program
        in_specs=[_full_spec(a.shape) for a in args],
        out_specs=_full_spec(out_shape.shape),
        out_shape=out_shape,
        compiler_params=pltpu.CompilerParams(
            dimension_semantics=("arbitrary",),
            vmem_limit_bytes=32 * 1024 * 1024),
    )(*args)


# -----------------------------------------------------------------------------
if __name__ == "__main__":
    B, L, D = 2, 16, 32          # batch, seq_length, d_core (== conv_in_channels)
    heads = 4
    ksize = 4
    conv_out_channels = 5
    n_classes = 8

    key = jax.random.PRNGKey(0)
    params = init_params(key, D, n_classes, L, ksize, heads, conv_out_channels)
    packed = pack_params(params, B=B, L=L, D=D, heads=heads, ksize=ksize,
                         C=conv_out_channels, n_classes=n_classes)
    x = jax.random.normal(jax.random.fold_in(key, 999), (B, L, D),
                          dtype=jnp.float32)

    fwd = jax.jit(partial(forward, heads=heads, ksize=ksize,
                          conv_out_channels=conv_out_channels,
                          n_classes=n_classes))
    out = jax.block_until_ready(fwd(packed, x))
    assert out.shape == (B, n_classes)
    assert bool(jnp.all(jnp.isfinite(out)))
    print("KERNEL_OK")
</pallas_src>

<mosaic_0001>
module attributes {stable_mosaic.version = 11 : i64} {
  func.func @_fused_forward_kernel(%arg0: i32, %arg1: memref<32x32xf32, #tpu.memory_space<vmem>>, %arg2: memref<16x32xf32, #tpu.memory_space<vmem>>, %arg3: memref<32x96xbf16, #tpu.memory_space<vmem>>, %arg4: memref<1x96xf32, #tpu.memory_space<vmem>>, %arg5: memref<32x32xbf16, #tpu.memory_space<vmem>>, %arg6: memref<1x32xf32, #tpu.memory_space<vmem>>, %arg7: memref<4x32x32xbf16, #tpu.memory_space<vmem>>, %arg8: memref<4x1x32xf32, #tpu.memory_space<vmem>>, %arg9: memref<1x32xf32, #tpu.memory_space<vmem>>, %arg10: memref<1x32xf32, #tpu.memory_space<vmem>>, %arg11: memref<1x32xf32, #tpu.memory_space<vmem>>, %arg12: memref<1x32xf32, #tpu.memory_space<vmem>>, %arg13: memref<32x4xbf16, #tpu.memory_space<vmem>>, %arg14: memref<4x32xbf16, #tpu.memory_space<vmem>>, %arg15: memref<32x32xbf16, #tpu.memory_space<vmem>>, %arg16: memref<4x5x1x32xf32, #tpu.memory_space<vmem>>, %arg17: memref<5x1x32xf32, #tpu.memory_space<vmem>>, %arg18: memref<2x8x5x8x32xf32, #tpu.memory_space<vmem>>, %arg19: memref<1x8xf32, #tpu.memory_space<vmem>>, %arg20: memref<2x8xf32, #tpu.memory_space<vmem>>) attributes {dimension_semantics = [#tpu.dimension_semantics<arbitrary>], iteration_bounds = array<i64: 1>, scalar_prefetch = 0 : i64, scratch_operands = 0 : i64, tpu.core_type = #tpu.core_type<tc>, window_params = [{pipeline_mode = #tpu.pipeline_mode<synchronous>, transform_indices = @transform_0, window_bounds = array<i64: 32, 32>}, {pipeline_mode = #tpu.pipeline_mode<synchronous>, transform_indices = @transform_1, window_bounds = array<i64: 16, 32>}, {pipeline_mode = #tpu.pipeline_mode<synchronous>, transform_indices = @transform_2, window_bounds = array<i64: 32, 96>}, {pipeline_mode = #tpu.pipeline_mode<synchronous>, transform_indices = @transform_3, window_bounds = array<i64: 1, 96>}, {pipeline_mode = #tpu.pipeline_mode<synchronous>, transform_indices = @transform_4, window_bounds = array<i64: 32, 32>}, {pipeline_mode = #tpu.pipeline_mode<synchronous>, transform_indices = @transform_5, window_bounds = array<i64: 1, 32>}, {pipeline_mode = #tpu.pipeline_mode<synchronous>, transform_indices = @transform_6, window_bounds = array<i64: 4, 32, 32>}, {pipeline_mode = #tpu.pipeline_mode<synchronous>, transform_indices = @transform_7, window_bounds = array<i64: 4, 1, 32>}, {pipeline_mode = #tpu.pipeline_mode<synchronous>, transform_indices = @transform_8, window_bounds = array<i64: 1, 32>}, {pipeline_mode = #tpu.pipeline_mode<synchronous>, transform_indices = @transform_9, window_bounds = array<i64: 1, 32>}, {pipeline_mode = #tpu.pipeline_mode<synchronous>, transform_indices = @transform_10, window_bounds = array<i64: 1, 32>}, {pipeline_mode = #tpu.pipeline_mode<synchronous>, transform_indices = @transform_11, window_bounds = array<i64: 1, 32>}, {pipeline_mode = #tpu.pipeline_mode<synchronous>, transform_indices = @transform_12, window_bounds = array<i64: 32, 4>}, {pipeline_mode = #tpu.pipeline_mode<synchronous>, transform_indices = @transform_13, window_bounds = array<i64: 4, 32>}, {pipeline_mode = #tpu.pipeline_mode<synchronous>, transform_indices = @transform_14, window_bounds = array<i64: 32, 32>}, {pipeline_mode = #tpu.pipeline_mode<synchronous>, transform_indices = @transform_15, window_bounds = array<i64: 4, 5, 1, 32>}, {pipeline_mode = #tpu.pipeline_mode<synchronous>, transform_indices = @transform_16, window_bounds = array<i64: 5, 1, 32>}, {pipeline_mode = #tpu.pipeline_mode<synchronous>, transform_indices = @transform_17, window_bounds = array<i64: 2, 8, 5, 8, 32>}, {pipeline_mode = #tpu.pipeline_mode<synchronous>, transform_indices = @transform_18, window_bounds = array<i64: 1, 8>}, {pipeline_mode = #tpu.pipeline_mode<synchronous>, transform_indices = @transform_19, window_bounds = array<i64: 2, 8>}]} {
    %c0 = arith.constant 0 : index
    %c0_0 = arith.constant 0 : index
    %0 = vector.load %arg1[%c0, %c0_0] : memref<32x32xf32, #tpu.memory_space<vmem>>, vector<32x32xf32>
    %1 = vector.shape_cast %0 : vector<32x32xf32> to vector<2x16x32xf32>
    %c0_1 = arith.constant 0 : index
    %c0_2 = arith.constant 0 : index
    %2 = vector.load %arg2[%c0_1, %c0_2] : memref<16x32xf32, #tpu.memory_space<vmem>>, vector<16x32xf32>
    %3 = vector.shape_cast %2 : vector<16x32xf32> to vector<1x16x32xf32>
    %4 = vector.broadcast %3 : vector<1x16x32xf32> to vector<2x16x32xf32>
    %5 = arith.addf %1, %4 : vector<2x16x32xf32>
    %6 = vector.shape_cast %5 : vector<2x16x32xf32> to vector<32x32xf32>
    %7 = arith.truncf %6 : vector<32x32xf32> to vector<32x32xbf16>
    %c0_3 = arith.constant 0 : index
    %c0_4 = arith.constant 0 : index
    %8 = vector.load %arg3[%c0_3, %c0_4] : memref<32x96xbf16, #tpu.memory_space<vmem>>, vector<32x96xbf16>
    %cst = arith.constant dense<0.000000e+00> : vector<32x96xf32>
    %9 = tpu.matmul %7, %8, %cst {dimension_numbers = #tpu.dot_dimension_numbers<[1], [0], [0], [1], [0, 0, 1, 1], [], []>} : vector<32x32xbf16>, vector<32x96xbf16>, vector<32x96xf32> -> vector<32x96xf32>
    %c0_5 = arith.constant 0 : index
    %c0_6 = arith.constant 0 : index
    %10 = vector.load %arg4[%c0_5, %c0_6] : memref<1x96xf32, #tpu.memory_space<vmem>>, vector<1x96xf32>
    %11 = vector.broadcast %10 : vector<1x96xf32> to vector<32x96xf32>
    %12 = arith.addf %9, %11 : vector<32x96xf32>
    %13 = vector.extract_strided_slice %12 {offsets = [0, 0], sizes = [32, 32], strides = [1, 1]} : vector<32x96xf32> to vector<32x32xf32>
    %14 = vector.extract_strided_slice %12 {offsets = [0, 32], sizes = [32, 32], strides = [1, 1]} : vector<32x96xf32> to vector<32x32xf32>
    %15 = vector.extract_strided_slice %12 {offsets = [0, 64], sizes = [32, 32], strides = [1, 1]} : vector<32x96xf32> to vector<32x32xf32>
    %16 = vector.shape_cast %13 : vector<32x32xf32> to vector<2x1x16x32xf32>
    %17 = vector.shape_cast %14 : vector<32x32xf32> to vector<1x2x16x32xf32>
    %18 = vector.broadcast %16 : vector<2x1x16x32xf32> to vector<2x2x16x32xf32>
    %19 = vector.broadcast %17 : vector<1x2x16x32xf32> to vector<2x2x16x32xf32>
    %20 = arith.mulf %18, %19 : vector<2x2x16x32xf32>
    %21 = vector.shape_cast %20 : vector<2x2x16x32xf32> to vector<64x32xf32>
    %22 = arith.truncf %21 : vector<64x32xf32> to vector<64x32xbf16>
    %c0_7 = arith.constant 0 : index
    %c0_8 = arith.constant 0 : index
    %23 = vector.load %arg13[%c0_7, %c0_8] : memref<32x4xbf16, #tpu.memory_space<vmem>>, vector<32x4xbf16>
    %cst_9 = arith.constant dense<0.000000e+00> : vector<64x4xf32>
    %24 = tpu.matmul %22, %23, %cst_9 {dimension_numbers = #tpu.dot_dimension_numbers<[1], [0], [0], [1], [0, 0, 1, 1], [], []>} : vector<64x32xbf16>, vector<32x4xbf16>, vector<64x4xf32> -> vector<64x4xf32>
    %25 = vector.shape_cast %24 : vector<64x4xf32> to vector<2x2x16x4xf32>
    %cst_10 = arith.constant dense<0xFF800000> : vector<2x16x4xf32>
    %26 = vector.multi_reduction <maximumf>, %25, %cst_10 [1] : vector<2x2x16x4xf32> to vector<2x16x4xf32>
    %27 = vector.shape_cast %26 : vector<2x16x4xf32> to vector<2x1x16x4xf32>
    %28 = vector.broadcast %27 : vector<2x1x16x4xf32> to vector<2x2x16x4xf32>
    %29 = arith.subf %25, %28 : vector<2x2x16x4xf32>
    %30 = math.exp %29 : vector<2x2x16x4xf32>
    %cst_11 = arith.constant dense<0.000000e+00> : vector<2x16x4xf32>
    %31 = vector.multi_reduction <add>, %30, %cst_11 [1] : vector<2x2x16x4xf32> to vector<2x16x4xf32>
    %32 = vector.shape_cast %31 : vector<2x16x4xf32> to vector<2x1x16x4xf32>
    %33 = tpu.reciprocal %32 {approx = true} : vector<2x1x16x4xf32> -> vector<2x1x16x4xf32>
    %34 = vector.broadcast %33 : vector<2x1x16x4xf32> to vector<2x2x16x4xf32>
    %35 = arith.mulf %30, %34 : vector<2x2x16x4xf32>
    %36 = vector.shape_cast %35 : vector<2x2x16x4xf32> to vector<64x4xf32>
    %37 = arith.truncf %36 : vector<64x4xf32> to vector<64x4xbf16>
    %c0_12 = arith.constant 0 : index
    %c0_13 = arith.constant 0 : index
    %38 = vector.load %arg14[%c0_12, %c0_13] : memref<4x32xbf16, #tpu.memory_space<vmem>>, vector<4x32xbf16>
    %cst_14 = arith.constant dense<0.000000e+00> : vector<64x32xf32>
    %39 = tpu.matmul %37, %38, %cst_14 {dimension_numbers = #tpu.dot_dimension_numbers<[1], [0], [0], [1], [0, 0, 1, 1], [], []>} : vector<64x4xbf16>, vector<4x32xbf16>, vector<64x32xf32> -> vector<64x32xf32>
    %40 = vector.shape_cast %39 : vector<64x32xf32> to vector<2x2x16x32xf32>
    %41 = vector.shape_cast %15 : vector<32x32xf32> to vector<1x2x16x32xf32>
    %42 = vector.broadcast %41 : vector<1x2x16x32xf32> to vector<2x2x16x32xf32>
    %43 = arith.mulf %40, %42 : vector<2x2x16x32xf32>
    %cst_15 = arith.constant dense<0.000000e+00> : vector<2x16x32xf32>
    %44 = vector.multi_reduction <add>, %43, %cst_15 [1] : vector<2x2x16x32xf32> to vector<2x16x32xf32>
    %45 = vector.shape_cast %44 : vector<2x16x32xf32> to vector<32x32xf32>
    %46 = arith.truncf %45 : vector<32x32xf32> to vector<32x32xbf16>
    %c0_16 = arith.constant 0 : index
    %c0_17 = arith.constant 0 : index
    %47 = vector.load %arg5[%c0_16, %c0_17] : memref<32x32xbf16, #tpu.memory_space<vmem>>, vector<32x32xbf16>
    %cst_18 = arith.constant dense<0.000000e+00> : vector<32x32xf32>
    %48 = tpu.matmul %46, %47, %cst_18 {dimension_numbers = #tpu.dot_dimension_numbers<[1], [0], [0], [1], [0, 0, 1, 1], [], []>} : vector<32x32xbf16>, vector<32x32xbf16>, vector<32x32xf32> -> vector<32x32xf32>
    %c0_19 = arith.constant 0 : index
    %c0_20 = arith.constant 0 : index
    %49 = vector.load %arg6[%c0_19, %c0_20] : memref<1x32xf32, #tpu.memory_space<vmem>>, vector<1x32xf32>
    %50 = vector.broadcast %49 : vector<1x32xf32> to vector<32x32xf32>
    %51 = arith.addf %48, %50 : vector<32x32xf32>
    %52 = arith.addf %6, %51 : vector<32x32xf32>
    %c0_21 = arith.constant 0 : index
    %c0_22 = arith.constant 0 : index
    %53 = vector.load %arg9[%c0_21, %c0_22] : memref<1x32xf32, #tpu.memory_space<vmem>>, vector<1x32xf32>
    %c0_23 = arith.constant 0 : index
    %c0_24 = arith.constant 0 : index
    %54 = vector.load %arg10[%c0_23, %c0_24] : memref<1x32xf32, #tpu.memory_space<vmem>>, vector<1x32xf32>
    %cst_25 = arith.constant dense<0.000000e+00> : vector<32xf32>
    %55 = vector.multi_reduction <add>, %52, %cst_25 [1] : vector<32x32xf32> to vector<32xf32>
    %56 = vector.shape_cast %55 : vector<32xf32> to vector<32x1xf32>
    %cst_26 = arith.constant 3.200000e+01 : f32
    %57 = vector.broadcast %cst_26 : f32 to vector<32x1xf32>
    %58 = arith.divf %56, %57 : vector<32x1xf32>
    %59 = vector.broadcast %58 : vector<32x1xf32> to vector<32x32xf32>
    %60 = arith.subf %52, %59 : vector<32x32xf32>
    %61 = arith.mulf %60, %60 : vector<32x32xf32>
    %cst_27 = arith.constant dense<0.000000e+00> : vector<32xf32>
    %62 = vector.multi_reduction <add>, %61, %cst_27 [1] : vector<32x32xf32> to vector<32xf32>
    %63 = vector.shape_cast %62 : vector<32xf32> to vector<32x1xf32>
    %cst_28 = arith.constant 3.200000e+01 : f32
    %64 = vector.broadcast %cst_28 : f32 to vector<32x1xf32>
    %65 = arith.divf %63, %64 : vector<32x1xf32>
    %cst_29 = arith.constant 9.99999974E-6 : f32
    %66 = vector.broadcast %cst_29 : f32 to vector<32x1xf32>
    %67 = arith.addf %65, %66 : vector<32x1xf32>
    %68 = math.rsqrt %67 : vector<32x1xf32>
    %69 = vector.broadcast %68 : vector<32x1xf32> to vector<32x32xf32>
    %70 = arith.mulf %60, %69 : vector<32x32xf32>
    %71 = vector.broadcast %53 : vector<1x32xf32> to vector<32x32xf32>
    %72 = arith.mulf %70, %71 : vector<32x32xf32>
    %73 = vector.broadcast %54 : vector<1x32xf32> to vector<32x32xf32>
    %74 = arith.addf %72, %73 : vector<32x32xf32>
    %75 = arith.truncf %74 : vector<32x32xf32> to vector<32x32xbf16>
    %c0_30 = arith.constant 0 : index
    %c0_31 = arith.constant 0 : index
    %c0_32 = arith.constant 0 : index
    %76 = vector.load %arg7[%c0_30, %c0_31, %c0_32] : memref<4x32x32xbf16, #tpu.memory_space<vmem>>, vector<1x32x32xbf16>
    %77 = vector.shape_cast %76 : vector<1x32x32xbf16> to vector<32x32xbf16>
    %cst_33 = arith.constant dense<0.000000e+00> : vector<32x32xf32>
    %78 = tpu.matmul %75, %77, %cst_33 {dimension_numbers = #tpu.dot_dimension_numbers<[1], [0], [0], [1], [0, 0, 1, 1], [], []>} : vector<32x32xbf16>, vector<32x32xbf16>, vector<32x32xf32> -> vector<32x32xf32>
    %c0_34 = arith.constant 0 : index
    %c0_35 = arith.constant 0 : index
    %c0_36 = arith.constant 0 : index
    %79 = vector.load %arg8[%c0_34, %c0_35, %c0_36] : memref<4x1x32xf32, #tpu.memory_space<vmem>>, vector<1x1x32xf32>
    %80 = vector.shape_cast %79 : vector<1x1x32xf32> to vector<1x32xf32>
    %81 = vector.broadcast %80 : vector<1x32xf32> to vector<32x32xf32>
    %82 = arith.addf %78, %81 : vector<32x32xf32>
    %cst_37 = arith.constant 5.000000e-01 : f32
    %83 = vector.broadcast %cst_37 : f32 to vector<32x32xf32>
    %84 = arith.mulf %83, %82 : vector<32x32xf32>
    %85 = arith.mulf %82, %82 : vector<32x32xf32>
    %86 = arith.mulf %85, %82 : vector<32x32xf32>
    %cst_38 = arith.constant 4.471500e-02 : f32
    %87 = vector.broadcast %cst_38 : f32 to vector<32x32xf32>
    %88 = arith.mulf %87, %86 : vector<32x32xf32>
    %89 = arith.addf %82, %88 : vector<32x32xf32>
    %cst_39 = arith.constant 0.797884583 : f32
    %90 = vector.broadcast %cst_39 : f32 to vector<32x32xf32>
    %91 = arith.mulf %90, %89 : vector<32x32xf32>
    %92 = math.tanh %91 : vector<32x32xf32>
    %cst_40 = arith.constant 1.000000e+00 : f32
    %93 = vector.broadcast %cst_40 : f32 to vector<32x32xf32>
    %94 = arith.addf %93, %92 : vector<32x32xf32>
    %95 = arith.mulf %84, %94 : vector<32x32xf32>
    %96 = arith.truncf %95 : vector<32x32xf32> to vector<32x32xbf16>
    %c1 = arith.constant 1 : index
    %c0_41 = arith.constant 0 : index
    %c0_42 = arith.constant 0 : index
    %97 = vector.load %arg7[%c1, %c0_41, %c0_42] : memref<4x32x32xbf16, #tpu.memory_space<vmem>>, vector<1x32x32xbf16>
    %98 = vector.shape_cast %97 : vector<1x32x32xbf16> to vector<32x32xbf16>
    %cst_43 = arith.constant dense<0.000000e+00> : vector<32x32xf32>
    %99 = tpu.matmul %96, %98, %cst_43 {dimension_numbers = #tpu.dot_dimension_numbers<[1], [0], [0], [1], [0, 0, 1, 1], [], []>} : vector<32x32xbf16>, vector<32x32xbf16>, vector<32x32xf32> -> vector<32x32xf32>
    %c1_44 = arith.constant 1 : index
    %c0_45 = arith.constant 0 : index
    %c0_46 = arith.constant 0 : index
    %100 = vector.load %arg8[%c1_44, %c0_45, %c0_46] : memref<4x1x32xf32, #tpu.memory_space<vmem>>, vector<1x1x32xf32>
    %101 = vector.shape_cast %100 : vector<1x1x32xf32> to vector<1x32xf32>
    %102 = vector.broadcast %101 : vector<1x32xf32> to vector<32x32xf32>
    %103 = arith.addf %99, %102 : vector<32x32xf32>
    %cst_47 = arith.constant 5.000000e-01 : f32
    %104 = vector.broadcast %cst_47 : f32 to vector<32x32xf32>
    %105 = arith.mulf %104, %103 : vector<32x32xf32>
    %106 = arith.mulf %103, %103 : vector<32x32xf32>
    %107 = arith.mulf %106, %103 : vector<32x32xf32>
    %cst_48 = arith.constant 4.471500e-02 : f32
    %108 = vector.broadcast %cst_48 : f32 to vector<32x32xf32>
    %109 = arith.mulf %108, %107 : vector<32x32xf32>
    %110 = arith.addf %103, %109 : vector<32x32xf32>
    %cst_49 = arith.constant 0.797884583 : f32
    %111 = vector.broadcast %cst_49 : f32 to vector<32x32xf32>
    %112 = arith.mulf %111, %110 : vector<32x32xf32>
    %113 = math.tanh %112 : vector<32x32xf32>
    %cst_50 = arith.constant 1.000000e+00 : f32
    %114 = vector.broadcast %cst_50 : f32 to vector<32x32xf32>
    %115 = arith.addf %114, %113 : vector<32x32xf32>
    %116 = arith.mulf %105, %115 : vector<32x32xf32>
    %117 = arith.truncf %116 : vector<32x32xf32> to vector<32x32xbf16>
    %c2 = arith.constant 2 : index
    %c0_51 = arith.constant 0 : index
    %c0_52 = arith.constant 0 : index
    %118 = vector.load %arg7[%c2, %c0_51, %c0_52] : memref<4x32x32xbf16, #tpu.memory_space<vmem>>, vector<1x32x32xbf16>
    %119 = vector.shape_cast %118 : vector<1x32x32xbf16> to vector<32x32xbf16>
    %cst_53 = arith.constant dense<0.000000e+00> : vector<32x32xf32>
    %120 = tpu.matmul %117, %119, %cst_53 {dimension_numbers = #tpu.dot_dimension_numbers<[1], [0], [0], [1], [0, 0, 1, 1], [], []>} : vector<32x32xbf16>, vector<32x32xbf16>, vector<32x32xf32> -> vector<32x32xf32>
    %c2_54 = arith.constant 2 : index
    %c0_55 = arith.constant 0 : index
    %c0_56 = arith.constant 0 : index
    %121 = vector.load %arg8[%c2_54, %c0_55, %c0_56] : memref<4x1x32xf32, #tpu.memory_space<vmem>>, vector<1x1x32xf32>
    %122 = vector.shape_cast %121 : vector<1x1x32xf32> to vector<1x32xf32>
    %123 = vector.broadcast %122 : vector<1x32xf32> to vector<32x32xf32>
    %124 = arith.addf %120, %123 : vector<32x32xf32>
    %cst_57 = arith.constant 5.000000e-01 : f32
    %125 = vector.broadcast %cst_57 : f32 to vector<32x32xf32>
    %126 = arith.mulf %125, %124 : vector<32x32xf32>
    %127 = arith.mulf %124, %124 : vector<32x32xf32>
    %128 = arith.mulf %127, %124 : vector<32x32xf32>
    %cst_58 = arith.constant 4.471500e-02 : f32
    %129 = vector.broadcast %cst_58 : f32 to vector<32x32xf32>
    %130 = arith.mulf %129, %128 : vector<32x32xf32>
    %131 = arith.addf %124, %130 : vector<32x32xf32>
    %cst_59 = arith.constant 0.797884583 : f32
    %132 = vector.broadcast %cst_59 : f32 to vector<32x32xf32>
    %133 = arith.mulf %132, %131 : vector<32x32xf32>
    %134 = math.tanh %133 : vector<32x32xf32>
    %cst_60 = arith.constant 1.000000e+00 : f32
    %135 = vector.broadcast %cst_60 : f32 to vector<32x32xf32>
    %136 = arith.addf %135, %134 : vector<32x32xf32>
    %137 = arith.mulf %126, %136 : vector<32x32xf32>
    %138 = arith.truncf %137 : vector<32x32xf32> to vector<32x32xbf16>
    %c3 = arith.constant 3 : index
    %c0_61 = arith.constant 0 : index
    %c0_62 = arith.constant 0 : index
    %139 = vector.load %arg7[%c3, %c0_61, %c0_62] : memref<4x32x32xbf16, #tpu.memory_space<vmem>>, vector<1x32x32xbf16>
    %140 = vector.shape_cast %139 : vector<1x32x32xbf16> to vector<32x32xbf16>
    %cst_63 = arith.constant dense<0.000000e+00> : vector<32x32xf32>
    %141 = tpu.matmul %138, %140, %cst_63 {dimension_numbers = #tpu.dot_dimension_numbers<[1], [0], [0], [1], [0, 0, 1, 1], [], []>} : vector<32x32xbf16>, vector<32x32xbf16>, vector<32x32xf32> -> vector<32x32xf32>
    %c3_64 = arith.constant 3 : index
    %c0_65 = arith.constant 0 : index
    %c0_66 = arith.constant 0 : index
    %142 = vector.load %arg8[%c3_64, %c0_65, %c0_66] : memref<4x1x32xf32, #tpu.memory_space<vmem>>, vector<1x1x32xf32>
    %143 = vector.shape_cast %142 : vector<1x1x32xf32> to vector<1x32xf32>
    %144 = vector.broadcast %143 : vector<1x32xf32> to vector<32x32xf32>
    %145 = arith.addf %141, %144 : vector<32x32xf32>
    %146 = arith.addf %6, %145 : vector<32x32xf32>
    %c0_67 = arith.constant 0 : index
    %c0_68 = arith.constant 0 : index
    %147 = vector.load %arg11[%c0_67, %c0_68] : memref<1x32xf32, #tpu.memory_space<vmem>>, vector<1x32xf32>
    %c0_69 = arith.constant 0 : index
    %c0_70 = arith.constant 0 : index
    %148 = vector.load %arg12[%c0_69, %c0_70] : memref<1x32xf32, #tpu.memory_space<vmem>>, vector<1x32xf32>
    %cst_71 = arith.constant dense<0.000000e+00> : vector<32xf32>
    %149 = vector.multi_reduction <add>, %146, %cst_71 [1] : vector<32x32xf32> to vector<32xf32>
    %150 = vector.shape_cast %149 : vector<32xf32> to vector<32x1xf32>
    %cst_72 = arith.constant 3.200000e+01 : f32
    %151 = vector.broadcast %cst_72 : f32 to vector<32x1xf32>
    %152 = arith.divf %150, %151 : vector<32x1xf32>
    %153 = vector.broadcast %152 : vector<32x1xf32> to vector<32x32xf32>
    %154 = arith.subf %146, %153 : vector<32x32xf32>
    %155 = arith.mulf %154, %154 : vector<32x32xf32>
    %cst_73 = arith.constant dense<0.000000e+00> : vector<32xf32>
    %156 = vector.multi_reduction <add>, %155, %cst_73 [1] : vector<32x32xf32> to vector<32xf32>
    %157 = vector.shape_cast %156 : vector<32xf32> to vector<32x1xf32>
    %cst_74 = arith.constant 3.200000e+01 : f32
    %158 = vector.broadcast %cst_74 : f32 to vector<32x1xf32>
    %159 = arith.divf %157, %158 : vector<32x1xf32>
    %cst_75 = arith.constant 9.99999974E-6 : f32
    %160 = vector.broadcast %cst_75 : f32 to vector<32x1xf32>
    %161 = arith.addf %159, %160 : vector<32x1xf32>
    %162 = math.rsqrt %161 : vector<32x1xf32>
    %163 = vector.broadcast %162 : vector<32x1xf32> to vector<32x32xf32>
    %164 = arith.mulf %154, %163 : vector<32x32xf32>
    %165 = vector.broadcast %147 : vector<1x32xf32> to vector<32x32xf32>
    %166 = arith.mulf %164, %165 : vector<32x32xf32>
    %167 = vector.broadcast %148 : vector<1x32xf32> to vector<32x32xf32>
    %168 = arith.addf %166, %167 : vector<32x32xf32>
    %c0_76 = arith.constant 0 : index
    %c0_77 = arith.constant 0 : index
    %169 = vector.load %arg15[%c0_76, %c0_77] : memref<32x32xbf16, #tpu.memory_space<vmem>>, vector<32x32xbf16>
    %170 = arith.truncf %168 : vector<32x32xf32> to vector<32x32xbf16>
    %cst_78 = arith.constant dense<0.000000e+00> : vector<32x32xf32>
    %171 = tpu.matmul %169, %170, %cst_78 {dimension_numbers = #tpu.dot_dimension_numbers<[1], [0], [0], [1], [0, 0, 1, 1], [], []>} : vector<32x32xbf16>, vector<32x32xbf16>, vector<32x32xf32> -> vector<32x32xf32>
    %172 = vector.shape_cast %171 : vector<32x32xf32> to vector<4x1x8x32xf32>
    %c0_79 = arith.constant 0 : index
    %c0_80 = arith.constant 0 : index
    %c0_81 = arith.constant 0 : index
    %c0_82 = arith.constant 0 : index
    %173 = vector.load %arg16[%c0_79, %c0_80, %c0_81, %c0_82] : memref<4x5x1x32xf32, #tpu.memory_space<vmem>>, vector<4x5x1x32xf32>
    %174 = vector.broadcast %173 : vector<4x5x1x32xf32> to vector<4x5x8x32xf32>
    %175 = vector.broadcast %172 : vector<4x1x8x32xf32> to vector<4x5x8x32xf32>
    %176 = arith.mulf %174, %175 : vector<4x5x8x32xf32>
    %cst_83 = arith.constant dense<0.000000e+00> : vector<5x8x32xf32>
    %177 = vector.multi_reduction <add>, %176, %cst_83 [0] : vector<4x5x8x32xf32> to vector<5x8x32xf32>
    %c0_84 = arith.constant 0 : index
    %c0_85 = arith.constant 0 : index
    %c0_86 = arith.constant 0 : index
    %178 = vector.load %arg17[%c0_84, %c0_85, %c0_86] : memref<5x1x32xf32, #tpu.memory_space<vmem>>, vector<5x1x32xf32>
    %179 = vector.broadcast %178 : vector<5x1x32xf32> to vector<5x8x32xf32>
    %180 = arith.addf %177, %179 : vector<5x8x32xf32>
    %cst_87 = arith.constant dense<0xFF800000> : vector<5x8xf32>
    %181 = vector.multi_reduction <maximumf>, %180, %cst_87 [2] : vector<5x8x32xf32> to vector<5x8xf32>
    %182 = vector.shape_cast %181 : vector<5x8xf32> to vector<5x8x1xf32>
    %183 = vector.broadcast %182 : vector<5x8x1xf32> to vector<5x8x32xf32>
    %184 = arith.subf %180, %183 : vector<5x8x32xf32>
    %185 = math.exp %184 : vector<5x8x32xf32>
    %cst_88 = arith.constant dense<0.000000e+00> : vector<5x8xf32>
    %186 = vector.multi_reduction <add>, %185, %cst_88 [2] : vector<5x8x32xf32> to vector<5x8xf32>
    %187 = vector.shape_cast %186 : vector<5x8xf32> to vector<5x8x1xf32>
    %188 = tpu.reciprocal %187 {approx = true} : vector<5x8x1xf32> -> vector<5x8x1xf32>
    %189 = vector.broadcast %188 : vector<5x8x1xf32> to vector<5x8x32xf32>
    %190 = arith.mulf %185, %189 : vector<5x8x32xf32>
    %191 = vector.shape_cast %190 : vector<5x8x32xf32> to vector<1x1x5x8x32xf32>
    %c0_89 = arith.constant 0 : index
    %c0_90 = arith.constant 0 : index
    %c0_91 = arith.constant 0 : index
    %c0_92 = arith.constant 0 : index
    %c0_93 = arith.constant 0 : index
    %192 = vector.load %arg18[%c0_89, %c0_90, %c0_91, %c0_92, %c0_93] : memref<2x8x5x8x32xf32, #tpu.memory_space<vmem>>, vector<2x8x5x8x32xf32>
    %193 = vector.broadcast %191 : vector<1x1x5x8x32xf32> to vector<2x8x5x8x32xf32>
    %194 = arith.mulf %193, %192 : vector<2x8x5x8x32xf32>
    %cst_94 = arith.constant dense<0.000000e+00> : vector<2x8x8x32xf32>
    %195 = vector.multi_reduction <add>, %194, %cst_94 [2] : vector<2x8x5x8x32xf32> to vector<2x8x8x32xf32>
    %cst_95 = arith.constant dense<0.000000e+00> : vector<2x8x8xf32>
    %196 = vector.multi_reduction <add>, %195, %cst_95 [3] : vector<2x8x8x32xf32> to vector<2x8x8xf32>
    %cst_96 = arith.constant dense<0.000000e+00> : vector<2x8xf32>
    %197 = vector.multi_reduction <add>, %196, %cst_96 [2] : vector<2x8x8xf32> to vector<2x8xf32>
    %c0_97 = arith.constant 0 : index
    %c0_98 = arith.constant 0 : index
    %198 = vector.load %arg19[%c0_97, %c0_98] : memref<1x8xf32, #tpu.memory_space<vmem>>, vector<1x8xf32>
    %199 = vector.broadcast %198 : vector<1x8xf32> to vector<2x8xf32>
    %200 = arith.addf %197, %199 : vector<2x8xf32>
    %c0_99 = arith.constant 0 : index
    %c0_100 = arith.constant 0 : index
    %201 = vector.load %arg20[%c0_99, %c0_100] : memref<2x8xf32, #tpu.memory_space<vmem>>, vector<2x8xf32>
    tpu.vector_store %arg20[%c0_99, %c0_100], %200 {strides = array<i32>} : memref<2x8xf32, #tpu.memory_space<vmem>>, vector<2x8xf32>,
    return
  }
  func.func @transform_0(%arg0: i32) -> (i32, i32) {
    %c0_i32 = arith.constant 0 : i32
    %c0_i32_0 = arith.constant 0 : i32
    %c0_i32_1 = arith.constant 0 : i32
    return %c0_i32, %c0_i32_0 : i32, i32
  }
  func.func @transform_1(%arg0: i32) -> (i32, i32) {
    %c0_i32 = arith.constant 0 : i32
    %c0_i32_0 = arith.constant 0 : i32
    %c0_i32_1 = arith.constant 0 : i32
    return %c0_i32, %c0_i32_0 : i32, i32
  }
  func.func @transform_2(%arg0: i32) -> (i32, i32) {
    %c0_i32 = arith.constant 0 : i32
    %c0_i32_0 = arith.constant 0 : i32
    %c0_i32_1 = arith.constant 0 : i32
    return %c0_i32, %c0_i32_0 : i32, i32
  }
  func.func @transform_3(%arg0: i32) -> (i32, i32) {
    %c0_i32 = arith.constant 0 : i32
    %c0_i32_0 = arith.constant 0 : i32
    %c0_i32_1 = arith.constant 0 : i32
    return %c0_i32, %c0_i32_0 : i32, i32
  }
  func.func @transform_4(%arg0: i32) -> (i32, i32) {
    %c0_i32 = arith.constant 0 : i32
    %c0_i32_0 = arith.constant 0 : i32
    %c0_i32_1 = arith.constant 0 : i32
    return %c0_i32, %c0_i32_0 : i32, i32
  }
  func.func @transform_5(%arg0: i32) -> (i32, i32) {
    %c0_i32 = arith.constant 0 : i32
    %c0_i32_0 = arith.constant 0 : i32
    %c0_i32_1 = arith.constant 0 : i32
    return %c0_i32, %c0_i32_0 : i32, i32
  }
  func.func @transform_6(%arg0: i32) -> (i32, i32, i32) {
    %c0_i32 = arith.constant 0 : i32
    %c0_i32_0 = arith.constant 0 : i32
    %c0_i32_1 = arith.constant 0 : i32
    %c0_i32_2 = arith.constant 0 : i32
    return %c0_i32, %c0_i32_0, %c0_i32_1 : i32, i32, i32
  }
  func.func @transform_7(%arg0: i32) -> (i32, i32, i32) {
    %c0_i32 = arith.constant 0 : i32
    %c0_i32_0 = arith.constant 0 : i32
    %c0_i32_1 = arith.constant 0 : i32
    %c0_i32_2 = arith.constant 0 : i32
    return %c0_i32, %c0_i32_0, %c0_i32_1 : i32, i32, i32
  }
  func.func @transform_8(%arg0: i32) -> (i32, i32) {
    %c0_i32 = arith.constant 0 : i32
    %c0_i32_0 = arith.constant 0 : i32
    %c0_i32_1 = arith.constant 0 : i32
    return %c0_i32, %c0_i32_0 : i32, i32
  }
  func.func @transform_9(%arg0: i32) -> (i32, i32) {
    %c0_i32 = arith.constant 0 : i32
    %c0_i32_0 = arith.constant 0 : i32
    %c0_i32_1 = arith.constant 0 : i32
    return %c0_i32, %c0_i32_0 : i32, i32
  }
  func.func @transform_10(%arg0: i32) -> (i32, i32) {
    %c0_i32 = arith.constant 0 : i32
    %c0_i32_0 = arith.constant 0 : i32
    %c0_i32_1 = arith.constant 0 : i32
    return %c0_i32, %c0_i32_0 : i32, i32
  }
  func.func @transform_11(%arg0: i32) -> (i32, i32) {
    %c0_i32 = arith.constant 0 : i32
    %c0_i32_0 = arith.constant 0 : i32
    %c0_i32_1 = arith.constant 0 : i32
    return %c0_i32, %c0_i32_0 : i32, i32
  }
  func.func @transform_12(%arg0: i32) -> (i32, i32) {
    %c0_i32 = arith.constant 0 : i32
    %c0_i32_0 = arith.constant 0 : i32
    %c0_i32_1 = arith.constant 0 : i32
    return %c0_i32, %c0_i32_0 : i32, i32
  }
  func.func @transform_13(%arg0: i32) -> (i32, i32) {
    %c0_i32 = arith.constant 0 : i32
    %c0_i32_0 = arith.constant 0 : i32
    %c0_i32_1 = arith.constant 0 : i32
    return %c0_i32, %c0_i32_0 : i32, i32
  }
  func.func @transform_14(%arg0: i32) -> (i32, i32) {
    %c0_i32 = arith.constant 0 : i32
    %c0_i32_0 = arith.constant 0 : i32
    %c0_i32_1 = arith.constant 0 : i32
    return %c0_i32, %c0_i32_0 : i32, i32
  }
  func.func @transform_15(%arg0: i32) -> (i32, i32, i32, i32) {
    %c0_i32 = arith.constant 0 : i32
    %c0_i32_0 = arith.constant 0 : i32
    %c0_i32_1 = arith.constant 0 : i32
    %c0_i32_2 = arith.constant 0 : i32
    %c0_i32_3 = arith.constant 0 : i32
    return %c0_i32, %c0_i32_0, %c0_i32_1, %c0_i32_2 : i32, i32, i32, i32
  }
  func.func @transform_16(%arg0: i32) -> (i32, i32, i32) {
    %c0_i32 = arith.constant 0 : i32
    %c0_i32_0 = arith.constant 0 : i32
    %c0_i32_1 = arith.constant 0 : i32
    %c0_i32_2 = arith.constant 0 : i32
    return %c0_i32, %c0_i32_0, %c0_i32_1 : i32, i32, i32
  }
  func.func @transform_17(%arg0: i32) -> (i32, i32, i32, i32, i32) {
    %c0_i32 = arith.constant 0 : i32
    %c0_i32_0 = arith.constant 0 : i32
    %c0_i32_1 = arith.constant 0 : i32
    %c0_i32_2 = arith.constant 0 : i32
    %c0_i32_3 = arith.constant 0 : i32
    %c0_i32_4 = arith.constant 0 : i32
    return %c0_i32, %c0_i32_0, %c0_i32_1, %c0_i32_2, %c0_i32_3 : i32, i32, i32, i32, i32
  }
  func.func @transform_18(%arg0: i32) -> (i32, i32) {
    %c0_i32 = arith.constant 0 : i32
    %c0_i32_0 = arith.constant 0 : i32
    %c0_i32_1 = arith.constant 0 : i32
    return %c0_i32, %c0_i32_0 : i32, i32
  }
  func.func @transform_19(%arg0: i32) -> (i32, i32) {
    %c0_i32 = arith.constant 0 : i32
    %c0_i32_0 = arith.constant 0 : i32
    %c0_i32_1 = arith.constant 0 : i32
    return %c0_i32, %c0_i32_0 : i32, i32
  }
}

</mosaic_0001>

<llo_original>
// kernel: forward.1
$region0: #{forward.1}
  #allocation0 [shape = 'u32[]', space=smem, size = 0x4, offset = 0x4, fixed_abs, tag = 'smem constant byte address 0x4 - core index']
  #allocation1 [shape = 'u32[144,128]{1,0:T(1,128)}', space=vmem, size = 0x12000, scoped, tag = 'internal scratch']
  %s0 = inlined_call_operand.hbm [shape: f32[32,32], index: 0, kind: input, shape index: {}]
  %s1 = inlined_call_operand.hbm [shape: f32[16,32], index: 1, kind: input, shape index: {}]
  %s2 = inlined_call_operand.vmem [shape: bf16[32,96], index: 2, kind: input, shape index: {}]
  %s3 = inlined_call_operand.hbm [shape: f32[1,96], index: 3, kind: input, shape index: {}]
  %s4 = inlined_call_operand.hbm [shape: bf16[32,32], index: 4, kind: input, shape index: {}]
  %s5 = inlined_call_operand.hbm [shape: f32[1,32], index: 5, kind: input, shape index: {}]
  %s6 = inlined_call_operand.vmem [shape: bf16[4,32,32], index: 6, kind: input, shape index: {}]
  %s7 = inlined_call_operand.hbm [shape: f32[4,1,32], index: 7, kind: input, shape index: {}]
  %s8 = inlined_call_operand.hbm [shape: f32[1,32], index: 8, kind: input, shape index: {}]
  %s9 = inlined_call_operand.hbm [shape: f32[1,32], index: 9, kind: input, shape index: {}]
  %s10 = inlined_call_operand.hbm [shape: f32[1,32], index: 10, kind: input, shape index: {}]
  %s11 = inlined_call_operand.hbm [shape: f32[1,32], index: 11, kind: input, shape index: {}]
  %s12 = inlined_call_operand.vmem [shape: bf16[32,4], index: 12, kind: input, shape index: {}]
  %s13 = inlined_call_operand.vmem [shape: bf16[4,32], index: 13, kind: input, shape index: {}]
  %s14 = inlined_call_operand.hbm [shape: bf16[32,32], index: 14, kind: input, shape index: {}]
  %s15 = inlined_call_operand.hbm [shape: f32[4,5,1,32], index: 15, kind: input, shape index: {}]
  %s16 = inlined_call_operand.hbm [shape: f32[5,1,32], index: 16, kind: input, shape index: {}]
  %s17 = inlined_call_operand.hbm [shape: f32[2,8,5,8,32], index: 17, kind: input, shape index: {}]
  %s18 = inlined_call_operand.hbm [shape: f32[1,8], index: 18, kind: input, shape index: {}]
  %s19 = inlined_call_operand.hbm [shape: f32[2,8], index: 19, kind: output, shape index: {}]
  %s20 = sld [smem:[#allocation0]]
  $region146: #{forward.1} parent=0
    _
  %s22 = ssub.s32 1, %s20
  %s23 = scalar_select 0, %s22, %s20
  $region1: #{forward.1} parent=0
    #allocation2 [shape = 'u8[16384]{0}', space=vmem, size = 0x4000, scoped, tag = 'input window, operand 0, single buffered']
    #allocation3 [shape = 's32[1]{0}', space=sflag, size = 0x4, scoped, tag = 'scoped memory for forward.1']
    #allocation4 [shape = 's32[1]{0}', space=sflag, size = 0x4, scoped, tag = 'scoped memory for forward.1']
    #allocation5 [shape = 'u8[8192]{0}', space=vmem, size = 0x2000, scoped, tag = 'input window, operand 1, single buffered']
    #allocation6 [shape = 's32[1]{0}', space=sflag, size = 0x4, scoped, tag = 'scoped memory for forward.1']
    #allocation7 [shape = 'u8[512]{0}', space=vmem, size = 0x400, scoped, tag = 'input window, operand 3, single buffered']
    #allocation8 [shape = 'u8[8192]{0}', space=vmem, size = 0x2000, scoped, tag = 'input window, operand 4, single buffered']
    #allocation9 [shape = 's32[1]{0}', space=sflag, size = 0x4, scoped, tag = 'scoped memory for forward.1']
    #allocation10 [shape = 'u8[512]{0}', space=vmem, size = 0x400, scoped, tag = 'input window, operand 5, single buffered']
    #allocation11 [shape = 'u8[2048]{0}', space=vmem, size = 0x800, scoped, tag = 'input window, operand 7, single buffered']
    #allocation12 [shape = 's32[1]{0}', space=sflag, size = 0x4, scoped, tag = 'scoped memory for forward.1']
    #allocation13 [shape = 'u8[512]{0}', space=vmem, size = 0x400, scoped, tag = 'input window, operand 8, single buffered']
    #allocation14 [shape = 'u8[512]{0}', space=vmem, size = 0x400, scoped, tag = 'input window, operand 9, single buffered']
    #allocation15 [shape = 's32[1]{0}', space=sflag, size = 0x4, scoped, tag = 'scoped memory for forward.1']
    #allocation16 [shape = 'u8[512]{0}', space=vmem, size = 0x400, scoped, tag = 'input window, operand 10, single buffered']
    #allocation17 [shape = 'u8[512]{0}', space=vmem, size = 0x400, scoped, tag = 'input window, operand 11, single buffered']
    #allocation18 [shape = 's32[1]{0}', space=sflag, size = 0x4, scoped, tag = 'scoped memory for forward.1']
    #allocation19 [shape = 'u8[8192]{0}', space=vmem, size = 0x2000, scoped, tag = 'input window, operand 14, single buffered']
    #allocation20 [shape = 'u8[10240]{0}', space=vmem, size = 0x2800, scoped, tag = 'input window, operand 15, single buffered']
    #allocation21 [shape = 's32[1]{0}', space=sflag, size = 0x4, scoped, tag = 'scoped memory for forward.1']
    #allocation22 [shape = 'u8[2560]{0}', space=vmem, size = 0xc00, scoped, tag = 'input window, operand 16, single buffered']
    #allocation23 [shape = 'u8[327680]{0}', space=vmem, size = 0x50000, scoped, tag = 'input window, operand 17, single buffered']
    #allocation24 [shape = 's32[1]{0}', space=sflag, size = 0x4, scoped, tag = 'scoped memory for forward.1']
    #allocation25 [shape = 'u8[512]{0}', space=vmem, size = 0x400, scoped, tag = 'input window, operand 18, single buffered']
    #allocation26 [shape = 'u8[1024]{0}', space=vmem, size = 0x400, scoped, tag = 'output window, operand 0, single buffered']
    %24 = vsyncpa [#allocation3], 0
    %25 = vsyncpa [#allocation6], 0
    %26 = vsyncpa [#allocation9], 0
    %27 = vsyncpa [#allocation12], 0
    %28 = vsyncpa [#allocation15], 0
    %29 = vsyncpa [#allocation18], 0
    %30 = vsyncpa [#allocation21], 0
    %31 = vsyncpa [#allocation24], 0
    %32 = vsyncpa [#allocation4], 0
    // Predicated region
    $region2: #{forward.1} parent=1 // pred_check
      _
    $region3: #{forward.1} parent=1 // pred_check_branch
      %34 = sbr.rel (0) target = $region5
    $region4: #{forward.1} parent=1 // pred_region
      %s36 = ssub.s32 512, 512
      %37 = vsyncadd [#allocation3], %s36
      %s38 = sshll.u32 [#allocation2], 4
      %s39 = int_to_ptr.vmem [resolvable:$true] %s38
      %44 = dma.hbm_to_vmem [thread:$0]  %s0, 512, %s39, [#allocation3], 128, 128, 8
    $region5: #{forward.1} parent=1 // pred_fallthru
      _
    // Predicated region
    $region6: #{forward.1} parent=1 // pred_check
      _
    $region7: #{forward.1} parent=1 // pred_check_branch
      %46 = sbr.rel (0) target = $region9
    $region8: #{forward.1} parent=1 // pred_region
      %s48 = ssub.s32 256, 256
      %49 = vsyncadd [#allocation6], %s48
      %s50 = sshll.u32 [#allocation5], 4
      %s51 = int_to_ptr.vmem [resolvable:$true] %s50
      %56 = dma.hbm_to_vmem [thread:$0]  %s1, 256, %s51, [#allocation6], 128, 128, 8
    $region9: #{forward.1} parent=1 // pred_fallthru
      _
    // Predicated region
    $region10: #{forward.1} parent=1 // pred_check
      _
    $region11: #{forward.1} parent=1 // pred_check_branch
      %58 = sbr.rel (0) target = $region13
    $region12: #{forward.1} parent=1 // pred_region
      _
    $region13: #{forward.1} parent=1 // pred_fallthru
      _
    // Predicated region
    $region14: #{forward.1} parent=1 // pred_check
      _
    $region15: #{forward.1} parent=1 // pred_check_branch
      %60 = sbr.rel (0) target = $region17
    $region16: #{forward.1} parent=1 // pred_region
      %s62 = ssub.s32 16, 16
      %63 = vsyncadd [#allocation6], %s62
      %s65 = sshll.u32 [#allocation7], 4
      %s66 = int_to_ptr.vmem [resolvable:$true] %s65
      %68 = dma.hbm_to_vmem [thread:$0]  %s3, 16, %s66, [#allocation6]
    $region17: #{forward.1} parent=1 // pred_fallthru
      _
    // Predicated region
    $region18: #{forward.1} parent=1 // pred_check
      _
    $region19: #{forward.1} parent=1 // pred_check_branch
      %70 = sbr.rel (0) target = $region21
    $region20: #{forward.1} parent=1 // pred_region
      %s72 = ssub.s32 256, 256
      %73 = vsyncadd [#allocation9], %s72
      %s74 = sshll.u32 [#allocation8], 4
      %s75 = int_to_ptr.vmem [resolvable:$true] %s74
      %80 = dma.hbm_to_vmem [thread:$0]  %s4, 256, %s75, [#allocation9], 64, 64, 4
    $region21: #{forward.1} parent=1 // pred_fallthru
      _
    // Predicated region
    $region22: #{forward.1} parent=1 // pred_check
      _
    $region23: #{forward.1} parent=1 // pred_check_branch
      %82 = sbr.rel (0) target = $region25
    $region24: #{forward.1} parent=1 // pred_region
      %s84 = ssub.s32 16, 16
      %85 = vsyncadd [#allocation9], %s84
      %s87 = sshll.u32 [#allocation10], 4
      %s88 = int_to_ptr.vmem [resolvable:$true] %s87
      %90 = dma.hbm_to_vmem [thread:$0]  %s5, 16, %s88, [#allocation9]
    $region25: #{forward.1} parent=1 // pred_fallthru
      _
    // Predicated region
    $region26: #{forward.1} parent=1 // pred_check
      _
    $region27: #{forward.1} parent=1 // pred_check_branch
      %92 = sbr.rel (0) target = $region29
    $region28: #{forward.1} parent=1 // pred_region
      _
    $region29: #{forward.1} parent=1 // pred_fallthru
      _
    // Predicated region
    $region30: #{forward.1} parent=1 // pred_check
      _
    $region31: #{forward.1} parent=1 // pred_check_branch
      %94 = sbr.rel (0) target = $region33
    $region32: #{forward.1} parent=1 // pred_region
      %s96 = ssub.s32 64, 64
      %97 = vsyncadd [#allocation12], %s96
      %s98 = sshll.u32 [#allocation11], 4
      %s99 = int_to_ptr.vmem [resolvable:$true] %s98
      %104 = dma.hbm_to_vmem [thread:$0]  %s7, 64, %s99, [#allocation12], 16, 16, 1
    $region33: #{forward.1} parent=1 // pred_fallthru
      _
    // Predicated region
    $region34: #{forward.1} parent=1 // pred_check
      _
    $region35: #{forward.1} parent=1 // pred_check_branch
      %106 = sbr.rel (0) target = $region37
    $region36: #{forward.1} parent=1 // pred_region
      %s108 = ssub.s32 16, 16
      %109 = vsyncadd [#allocation12], %s108
      %s111 = sshll.u32 [#allocation13], 4
      %s112 = int_to_ptr.vmem [resolvable:$true] %s111
      %114 = dma.hbm_to_vmem [thread:$0]  %s8, 16, %s112, [#allocation12]
    $region37: #{forward.1} parent=1 // pred_fallthru
      _
    // Predicated region
    $region38: #{forward.1} parent=1 // pred_check
      _
    $region39: #{forward.1} parent=1 // pred_check_branch
      %116 = sbr.rel (0) target = $region41
    $region40: #{forward.1} parent=1 // pred_region
      %s118 = ssub.s32 16, 16
      %119 = vsyncadd [#allocation15], %s118
      %s121 = sshll.u32 [#allocation14], 4
      %s122 = int_to_ptr.vmem [resolvable:$true] %s121
      %124 = dma.hbm_to_vmem [thread:$0]  %s9, 16, %s122, [#allocation15]
    $region41: #{forward.1} parent=1 // pred_fallthru
      _
    // Predicated region
    $region42: #{forward.1} parent=1 // pred_check
      _
    $region43: #{forward.1} parent=1 // pred_check_branch
      %126 = sbr.rel (0) target = $region45
    $region44: #{forward.1} parent=1 // pred_region
      %s128 = ssub.s32 16, 16
      %129 = vsyncadd [#allocation15], %s128
      %s131 = sshll.u32 [#allocation16], 4
      %s132 = int_to_ptr.vmem [resolvable:$true] %s131
      %134 = dma.hbm_to_vmem [thread:$0]  %s10, 16, %s132, [#allocation15]
    $region45: #{forward.1} parent=1 // pred_fallthru
      _
    // Predicated region
    $region46: #{forward.1} parent=1 // pred_check
      _
    $region47: #{forward.1} parent=1 // pred_check_branch
      %136 = sbr.rel (0) target = $region49
    $region48: #{forward.1} parent=1 // pred_region
      %s138 = ssub.s32 16, 16
      %139 = vsyncadd [#allocation18], %s138
      %s141 = sshll.u32 [#allocation17], 4
      %s142 = int_to_ptr.vmem [resolvable:$true] %s141
      %144 = dma.hbm_to_vmem [thread:$0]  %s11, 16, %s142, [#allocation18]
    $region49: #{forward.1} parent=1 // pred_fallthru
      _
    // Predicated region
    $region50: #{forward.1} parent=1 // pred_check
      _
    $region51: #{forward.1} parent=1 // pred_check_branch
      %146 = sbr.rel (0) target = $region53
    $region52: #{forward.1} parent=1 // pred_region
      _
    $region53: #{forward.1} parent=1 // pred_fallthru
      _
    // Predicated region
    $region54: #{forward.1} parent=1 // pred_check
      _
    $region55: #{forward.1} parent=1 // pred_check_branch
      %148 = sbr.rel (0) target = $region57
    $region56: #{forward.1} parent=1 // pred_region
      _
    $region57: #{forward.1} parent=1 // pred_fallthru
      _
    // Predicated region
    $region58: #{forward.1} parent=1 // pred_check
      _
    $region59: #{forward.1} parent=1 // pred_check_branch
      %150 = sbr.rel (0) target = $region61
    $region60: #{forward.1} parent=1 // pred_region
      %s152 = ssub.s32 256, 256
      %153 = vsyncadd [#allocation18], %s152
      %s154 = sshll.u32 [#allocation19], 4
      %s155 = int_to_ptr.vmem [resolvable:$true] %s154
      %160 = dma.hbm_to_vmem [thread:$0]  %s14, 256, %s155, [#allocation18], 64, 64, 4
    $region61: #{forward.1} parent=1 // pred_fallthru
      _
    // Predicated region
    $region62: #{forward.1} parent=1 // pred_check
      _
    $region63: #{forward.1} parent=1 // pred_check_branch
      %162 = sbr.rel (0) target = $region65
    $region64: #{forward.1} parent=1 // pred_region
      %s164 = ssub.s32 320, 320
      %165 = vsyncadd [#allocation21], %s164
      %s166 = sshll.u32 [#allocation20], 4
      %s167 = int_to_ptr.vmem [resolvable:$true] %s166
      %172 = dma.hbm_to_vmem [thread:$0]  %s15, 320, %s167, [#allocation21], 16, 16, 1
    $region65: #{forward.1} parent=1 // pred_fallthru
      _
    // Predicated region
    $region66: #{forward.1} parent=1 // pred_check
      _
    $region67: #{forward.1} parent=1 // pred_check_branch
      %174 = sbr.rel (0) target = $region69
    $region68: #{forward.1} parent=1 // pred_region
      %s176 = ssub.s32 80, 80
      %177 = vsyncadd [#allocation21], %s176
      %s178 = sshll.u32 [#allocation22], 4
      %s179 = int_to_ptr.vmem [resolvable:$true] %s178
      %184 = dma.hbm_to_vmem [thread:$0]  %s16, 80, %s179, [#allocation21], 16, 16, 1
    $region69: #{forward.1} parent=1 // pred_fallthru
      _
    // Predicated region
    $region70: #{forward.1} parent=1 // pred_check
      _
    $region71: #{forward.1} parent=1 // pred_check_branch
      %186 = sbr.rel (0) target = $region73
    $region72: #{forward.1} parent=1 // pred_region
      %s188 = ssub.s32 10240, 10240
      %189 = vsyncadd [#allocation24], %s188
      %s190 = sshll.u32 [#allocation23], 4
      %s191 = int_to_ptr.vmem [resolvable:$true] %s190
      %196 = dma.hbm_to_vmem [thread:$0]  %s17, 10240, %s191, [#allocation24], 128, 128, 8
    $region73: #{forward.1} parent=1 // pred_fallthru
      _
    // Predicated region
    $region74: #{forward.1} parent=1 // pred_check
      _
    $region75: #{forward.1} parent=1 // pred_check_branch
      %198 = sbr.rel (0) target = $region77
    $region76: #{forward.1} parent=1 // pred_region
      %s200 = ssub.s32 16, 16
      %201 = vsyncadd [#allocation24], %s200
      %s203 = sshll.u32 [#allocation25], 4
      %s204 = int_to_ptr.vmem [resolvable:$true] %s203
      %206 = dma.hbm_to_vmem [thread:$0]  %s18, 16, %s204, [#allocation24]
    $region77: #{forward.1} parent=1 // pred_fallthru
      _
    // Predicated region
    $region78: #{forward.1} parent=1 // pred_check
      _
    $region79: #{forward.1} parent=1 // pred_check_branch
      %208 = sbr.rel (0) target = $region81
    $region80: #{forward.1} parent=1 // pred_region
      %209 = dma.done [#allocation3], 512
    $region81: #{forward.1} parent=1 // pred_fallthru
      _
    // Predicated region
    $region82: #{forward.1} parent=1 // pred_check
      _
    $region83: #{forward.1} parent=1 // pred_check_branch
      %211 = sbr.rel (0) target = $region85
    $region84: #{forward.1} parent=1 // pred_region
      %212 = dma.done [#allocation6], 256
    $region85: #{forward.1} parent=1 // pred_fallthru
      _
    // Predicated region
    $region86: #{forward.1} parent=1 // pred_check
      _
    $region87: #{forward.1} parent=1 // pred_check_branch
      %214 = sbr.rel (0) target = $region89
    $region88: #{forward.1} parent=1 // pred_region
      %215 = dma.done [#allocation6], 16
    $region89: #{forward.1} parent=1 // pred_fallthru
      _
    // Predicated region
    $region90: #{forward.1} parent=1 // pred_check
      _
    $region91: #{forward.1} parent=1 // pred_check_branch
      %217 = sbr.rel (0) target = $region93
    $region92: #{forward.1} parent=1 // pred_region
      %218 = dma.done [#allocation9], 256
    $region93: #{forward.1} parent=1 // pred_fallthru
      _
    // Predicated region
    $region94: #{forward.1} parent=1 // pred_check
      _
    $region95: #{forward.1} parent=1 // pred_check_branch
      %220 = sbr.rel (0) target = $region97
    $region96: #{forward.1} parent=1 // pred_region
      %221 = dma.done [#allocation9], 16
    $region97: #{forward.1} parent=1 // pred_fallthru
      _
    // Predicated region
    $region98: #{forward.1} parent=1 // pred_check
      _
    $region99: #{forward.1} parent=1 // pred_check_branch
      %223 = sbr.rel (0) target = $region101
    $region100: #{forward.1} parent=1 // pred_region
      %224 = dma.done [#allocation12], 64
    $region101: #{forward.1} parent=1 // pred_fallthru
      _
    // Predicated region
    $region102: #{forward.1} parent=1 // pred_check
      _
    $region103: #{forward.1} parent=1 // pred_check_branch
      %226 = sbr.rel (0) target = $region105
    $region104: #{forward.1} parent=1 // pred_region
      %227 = dma.done [#allocation12], 16
    $region105: #{forward.1} parent=1 // pred_fallthru
      _
    // Predicated region
    $region106: #{forward.1} parent=1 // pred_check
      _
    $region107: #{forward.1} parent=1 // pred_check_branch
      %229 = sbr.rel (0) target = $region109
    $region108: #{forward.1} parent=1 // pred_region
      %230 = dma.done [#allocation15], 16
    $region109: #{forward.1} parent=1 // pred_fallthru
      _
    // Predicated region
    $region110: #{forward.1} parent=1 // pred_check
      _
    $region111: #{forward.1} parent=1 // pred_check_branch
      %232 = sbr.rel (0) target = $region113
    $region112: #{forward.1} parent=1 // pred_region
      %233 = dma.done [#allocation15], 16
    $region113: #{forward.1} parent=1 // pred_fallthru
      _
    // Predicated region
    $region114: #{forward.1} parent=1 // pred_check
      _
    $region115: #{forward.1} parent=1 // pred_check_branch
      %235 = sbr.rel (0) target = $region117
    $region116: #{forward.1} parent=1 // pred_region
      %236 = dma.done [#allocation18], 16
    $region117: #{forward.1} parent=1 // pred_fallthru
      _
    // Predicated region
    $region118: #{forward.1} parent=1 // pred_check
      _
    $region119: #{forward.1} parent=1 // pred_check_branch
      %238 = sbr.rel (0) target = $region121
    $region120: #{forward.1} parent=1 // pred_region
      %239 = dma.done [#allocation18], 256
    $region121: #{forward.1} parent=1 // pred_fallthru
      _
    // Predicated region
    $region122: #{forward.1} parent=1 // pred_check
      _
    $region123: #{forward.1} parent=1 // pred_check_branch
      %241 = sbr.rel (0) target = $region125
    $region124: #{forward.1} parent=1 // pred_region
      %242 = dma.done [#allocation21], 320
    $region125: #{forward.1} parent=1 // pred_fallthru
      _
    // Predicated region
    $region126: #{forward.1} parent=1 // pred_check
      _
    $region127: #{forward.1} parent=1 // pred_check_branch
      %244 = sbr.rel (0) target = $region129
    $region128: #{forward.1} parent=1 // pred_region
      %245 = dma.done [#allocation21], 80
    $region129: #{forward.1} parent=1 // pred_fallthru
      _
    // Predicated region
    $region130: #{forward.1} parent=1 // pred_check
      _
    $region131: #{forward.1} parent=1 // pred_check_branch
      %247 = sbr.rel (0) target = $region133
    $region132: #{forward.1} parent=1 // pred_region
      %248 = dma.done [#allocation24], 10240
    $region133: #{forward.1} parent=1 // pred_fallthru
      _
    // Predicated region
    $region134: #{forward.1} parent=1 // pred_check
      _
    $region135: #{forward.1} parent=1 // pred_check_branch
      %250 = sbr.rel (0) target = $region137
    $region136: #{forward.1} parent=1 // pred_region
      %251 = dma.done [#allocation24], 16
    $region137: #{forward.1} parent=1 // pred_fallthru
      _
    %v253 = vld [vmem:[#allocation2] sm:$0xff]
    %v254 = vld [vmem:[#allocation2 + $0x8] sm:$0xff]
    %v255 = vld [vmem:[#allocation2 + $0x10] sm:$0xff]
    %v256 = vld [vmem:[#allocation2 + $0x18] sm:$0xff]
    %v257 = vld [vmem:[#allocation5] sm:$0xff]
    %v258 = vld [vmem:[#allocation5 + $0x8] sm:$0xff]
    %v259 = vadd.f32 %v253, %v257
    %v260 = vadd.f32 %v254, %v258
    %v261 = vadd.f32 %v255, %v257
    %v262 = vadd.f32 %v256, %v258
    %v263 = vpack.c.bf16 %v260, %v259
    %v264 = vpack.c.bf16 %v262, %v261
    %v265 = vld [vmem:[%s2] sm:$0xf]
    %v266 = vld [vmem:[%s2 + $0x4] sm:$0xf]
    %v267 = vld [vmem:[%s2 + $0x8] sm:$0xf]
    %v268 = vld [vmem:[%s2 + $0xc] sm:$0xf]
    %v269 = vld [vmem:[#allocation7] sm:$0x1]
    %v271 = vlaneseq
    %v272 = vshrl.u32 %v271, 7
    %v273 = vsub.s32 0, %v272
    %v274 = vrot.slane %v269, %v273
    %v280 = vunpack.c.l.b16 %v265
    %v281 = vunpack.c.l.b16 %v266
    %v282 = vunpack.c.l.b16 %v267
    %v283 = vunpack.c.l.b16 %v268
    %v284 = vpack.c.b16 %v281, %v280
    %v285 = vpack.c.b16 %v283, %v282
    %vm288 = vcmask 261120
    %v290 = vsel %vm288, %v263, 0
    %v293 = vsel %vm288, %v264, 0
    %295 = vmatprep.subr.bf16.mxu0 0
    %296 = vmatpush1.bf16.msra.mxu0 %v284
    %297 = vmatprep.subr.bf16.mxu0 0
    %298 = vmatpush1.bf16.msra.mxu0 %v285
    %299 = vmatprep.subr.bf16.mxu0 0
    %300 = vmatpush1.bf16.msra.mxu0 0
    %301 = vmatprep.subr.bf16.mxu0 0
    %302 = vmatpush1.bf16.msra.mxu0 0
    %303 = vmatprep.subr.bf16.mxu0 0
    %304 = vmatpush1.bf16.msra.mxu0 0
    %305 = vmatprep.subr.bf16.mxu0 0
    %306 = vmatpush1.bf16.msra.mxu0 0
    %307 = vmatprep.subr.bf16.mxu0 0
    %308 = vmatpush1.bf16.msra.mxu0 0
    %309 = vmatprep.subr.bf16.mxu0 0
    %310 = vmatpush1.bf16.msra.mxu0 0
    %311 = vmatprep.subr.bf16.mxu0 0
    %312 = vmatpush1.bf16.msra.mxu0 0
    %313 = vmatprep.subr.bf16.mxu0 0
    %314 = vmatpush1.bf16.msra.mxu0 0
    %315 = vmatprep.subr.bf16.mxu0 0
    %316 = vmatpush1.bf16.msra.mxu0 0
    %317 = vmatprep.subr.bf16.mxu0 0
    %318 = vmatpush1.bf16.msra.mxu0 0
    %319 = vmatprep.subr.bf16.mxu0 0
    %320 = vmatpush1.bf16.msra.mxu0 0
    %321 = vmatprep.subr.bf16.mxu0 0
    %322 = vmatpush1.bf16.msra.mxu0 0
    %323 = vmatprep.subr.bf16.mxu0 0
    %324 = vmatpush1.bf16.msra.mxu0 0
    %325 = vmatprep.subr.bf16.mxu0 0
    %326 = vmatpush1.bf16.msra.mxu0 0
    %327 = vmatprep.mubr.bf16.mxu0 0
    %328 = vmatmul.mubr.bf16.gmra.mrb[0].mxu0 %v290
    %v329 = vpop.f32.mrb[0].mxu0
    %v330 = vadd.f32 %v274, %v329
    %v331 = vpop.f32.mrb[0].mxu0
    %v332 = vpop.f32.mrb[0].mxu0
    %v333 = vadd.f32 %v274, %v332
    %v334 = vpop.f32.mrb[0].mxu0
    %335 = vmatprep.mubr.bf16.mxu0 0
    %336 = vmatmul.mubr.bf16.gmra.mrb[0].mxu0 %v293
    %v337 = vpop.f32.mrb[0].mxu0
    %v338 = vadd.f32 %v274, %v337
    %v339 = vpop.f32.mrb[0].mxu0
    %v340 = vpop.f32.mrb[0].mxu0
    %v341 = vadd.f32 %v274, %v340
    %v342 = vpop.f32.mrb[0].mxu0
    %343 = vdwg.mxu0
    %348 = vrot.lane.b32.xlu0 %v330, 96
    %v349 = vpop.permute.xlu0 %348
    %350 = vrot.lane.b32.xlu0 %v333, 96
    %v351 = vpop.permute.xlu0 %350
    %352 = vrot.lane.b32.xlu0 %v338, 96
    %v353 = vpop.permute.xlu0 %352
    %354 = vrot.lane.b32.xlu0 %v341, 96
    %v355 = vpop.permute.xlu0 %354
    %v360 = vmul.f32 %v330, %v349
    %v361 = vmul.f32 %v333, %v351
    %v362 = vmul.f32 %v330, %v353
    %v363 = vmul.f32 %v333, %v355
    %v364 = vmul.f32 %v338, %v349
    %v365 = vmul.f32 %v341, %v351
    %v366 = vmul.f32 %v338, %v353
    %v367 = vmul.f32 %v341, %v355
    %v368 = vpack.c.bf16 %v361, %v360
    %v369 = vpack.c.bf16 %v363, %v362
    %v370 = vpack.c.bf16 %v365, %v364
    %v371 = vpack.c.bf16 %v367, %v366
    %v372 = vld [vmem:[%s12] sm:$0xf]
    %v373 = vld [vmem:[%s12 + $0x4] sm:$0xf]
    %v374 = vld [vmem:[%s12 + $0x8] sm:$0xf]
    %v375 = vld [vmem:[%s12 + $0xc] sm:$0xf]
    %v380 = vunpack.c.l.b16 %v372
    %v381 = vunpack.c.l.b16 %v373
    %v382 = vunpack.c.l.b16 %v374
    %v383 = vunpack.c.l.b16 %v375
    %v384 = vpack.c.b16 %v381, %v380
    %v385 = vpack.c.b16 %v383, %v382
    %v389 = vsel %vm288, %v368, 0
    %v392 = vsel %vm288, %v369, 0
    %v395 = vsel %vm288, %v370, 0
    %v398 = vsel %vm288, %v371, 0
    %400 = vmatprep.subr.bf16.mxu0 0
    %401 = vmatpush1.bf16.msra.mxu0 %v384
    %402 = vmatprep.subr.bf16.mxu0 0
    %403 = vmatpush1.bf16.msra.mxu0 %v385
    %404 = vmatprep.subr.bf16.mxu0 0
    %405 = vmatpush1.bf16.msra.mxu0 0
    %406 = vmatprep.subr.bf16.mxu0 0
    %407 = vmatpush1.bf16.msra.mxu0 0
    %408 = vmatprep.subr.bf16.mxu0 0
    %409 = vmatpush1.bf16.msra.mxu0 0
    %410 = vmatprep.subr.bf16.mxu0 0
    %411 = vmatpush1.bf16.msra.mxu0 0
    %412 = vmatprep.subr.bf16.mxu0 0
    %413 = vmatpush1.bf16.msra.mxu0 0
    %414 = vmatprep.subr.bf16.mxu0 0
    %415 = vmatpush1.bf16.msra.mxu0 0
    %416 = vmatprep.subr.bf16.mxu0 0
    %417 = vmatpush1.bf16.msra.mxu0 0
    %418 = vmatprep.subr.bf16.mxu0 0
    %419 = vmatpush1.bf16.msra.mxu0 0
    %420 = vmatprep.subr.bf16.mxu0 0
    %421 = vmatpush1.bf16.msra.mxu0 0
    %422 = vmatprep.subr.bf16.mxu0 0
    %423 = vmatpush1.bf16.msra.mxu0 0
    %424 = vmatprep.subr.bf16.mxu0 0
    %425 = vmatpush1.bf16.msra.mxu0 0
    %426 = vmatprep.subr.bf16.mxu0 0
    %427 = vmatpush1.bf16.msra.mxu0 0
    %428 = vmatprep.subr.bf16.mxu0 0
    %429 = vmatpush1.bf16.msra.mxu0 0
    %430 = vmatprep.subr.bf16.mxu0 0
    %431 = vmatpush1.bf16.msra.mxu0 0
    %432 = vmatprep.mubr.bf16.mxu0 0
    %433 = vmatmul.mubr.bf16.gmra.mrb[0].mxu0 %v389
    %v434 = vpop.f32.mrb[0].mxu0
    %v435 = vadd.f32 0.0, %v434
    %v436 = vpop.f32.mrb[0].mxu0
    %v437 = vpop.f32.mrb[0].mxu0
    %v438 = vadd.f32 0.0, %v437
    %v439 = vpop.f32.mrb[0].mxu0
    %440 = vmatprep.mubr.bf16.mxu0 0
    %441 = vmatmul.mubr.bf16.gmra.mrb[0].mxu0 %v392
    %v442 = vpop.f32.mrb[0].mxu0
    %v443 = vadd.f32 0.0, %v442
    %v444 = vpop.f32.mrb[0].mxu0
    %v445 = vpop.f32.mrb[0].mxu0
    %v446 = vadd.f32 0.0, %v445
    %v447 = vpop.f32.mrb[0].mxu0
    %448 = vmatprep.mubr.bf16.mxu0 0
    %449 = vmatmul.mubr.bf16.gmra.mrb[0].mxu0 %v395
    %v450 = vpop.f32.mrb[0].mxu0
    %v451 = vadd.f32 0.0, %v450
    %v452 = vpop.f32.mrb[0].mxu0
    %v453 = vpop.f32.mrb[0].mxu0
    %v454 = vadd.f32 0.0, %v453
    %v455 = vpop.f32.mrb[0].mxu0
    %456 = vmatprep.mubr.bf16.mxu0 0
    %457 = vmatmul.mubr.bf16.gmra.mrb[0].mxu0 %v398
    %v458 = vpop.f32.mrb[0].mxu0
    %v459 = vadd.f32 0.0, %v458
    %v460 = vpop.f32.mrb[0].mxu0
    %v461 = vpop.f32.mrb[0].mxu0
    %v462 = vadd.f32 0.0, %v461
    %v463 = vpop.f32.mrb[0].mxu0
    %464 = vdwg.mxu0
    %vm465 = vcmask 31744
    %v466 = vsel %vm465, %v435, -inf
    %v467 = vsel %vm465, %v443, -inf
    %v468 = vmax.f32 %v466, %v467
    %v469 = vsel %vm465, %v438, -inf
    %v470 = vsel %vm465, %v446, -inf
    %v471 = vmax.f32 %v469, %v470
    %v472 = vsel %vm465, %v451, -inf
    %v473 = vsel %vm465, %v459, -inf
    %v474 = vmax.f32 %v472, %v473
    %v475 = vsel %vm465, %v454, -inf
    %v476 = vsel %vm465, %v462, -inf
    %v477 = vmax.f32 %v475, %v476
    %v478 = vsub.f32 %v435, %v468
    %v479 = vsub.f32 %v438, %v471
    %v480 = vsub.f32 %v443, %v468
    %v481 = vsub.f32 %v446, %v471
    %v482 = vsub.f32 %v451, %v474
    %v483 = vsub.f32 %v454, %v477
    %v484 = vsub.f32 %v459, %v474
    %v485 = vsub.f32 %v462, %v477
    %v486 = vmul.f32 %v478, 1.442695
    %v487 = vpow.pop %v486
    %v488 = vmul.f32 %v479, 1.442695
    %v489 = vpow.pop %v488
    %v490 = vmul.f32 %v480, 1.442695
    %v491 = vpow.pop %v490
    %v492 = vmul.f32 %v481, 1.442695
    %v493 = vpow.pop %v492
    %v494 = vmul.f32 %v482, 1.442695
    %v495 = vpow.pop %v494
    %v496 = vmul.f32 %v483, 1.442695
    %v497 = vpow.pop %v496
    %v498 = vmul.f32 %v484, 1.442695
    %v499 = vpow.pop %v498
    %v500 = vmul.f32 %v485, 1.442695
    %v501 = vpow.pop %v500
    %v502 = vsel %vm465, %v487, 0.0
    %v503 = vsel %vm465, %v491, 0.0
    %v504 = vadd.f32 %v502, %v503
    %v505 = vsel %vm465, %v489, 0.0
    %v506 = vsel %vm465, %v493, 0.0
    %v507 = vadd.f32 %v505, %v506
    %v508 = vsel %vm465, %v495, 0.0
    %v509 = vsel %vm465, %v499, 0.0
    %v510 = vadd.f32 %v508, %v509
    %v511 = vsel %vm465, %v497, 0.0
    %v512 = vsel %vm465, %v501, 0.0
    %v513 = vadd.f32 %v511, %v512
    %v514 = vrcp.pop %v504
    %v515 = vrcp.pop %v507
    %v516 = vrcp.pop %v510
    %v517 = vrcp.pop %v513
    %v518 = vmul.f32 %v487, %v514
    %v519 = vmul.f32 %v489, %v515
    %v520 = vmul.f32 %v491, %v514
    %v521 = vmul.f32 %v493, %v515
    %v522 = vmul.f32 %v495, %v516
    %v523 = vmul.f32 %v497, %v517
    %v524 = vmul.f32 %v499, %v516
    %v525 = vmul.f32 %v501, %v517
    %v526 = vpack.c.bf16 %v519, %v518
    %v527 = vpack.c.bf16 %v521, %v520
    %v528 = vpack.c.bf16 %v523, %v522
    %v529 = vpack.c.bf16 %v525, %v524
    %v530 = vld [vmem:[%s13] sm:$0x3]
    %v532 = vsel %vm465, %v526, 0
    %v535 = vsel %vm465, %v527, 0
    %v538 = vsel %vm465, %v528, 0
    %v541 = vsel %vm465, %v529, 0
    %vm543 = vcmask 1041408
    %v545 = vsel %vm543, %v530, 0
    %547 = vmatprep.subr.bf16.mxu0 0
    %548 = vmatpush1.bf16.msra.mxu0 %v545
    %549 = vmatprep.subr.bf16.mxu0 0
    %550 = vmatpush1.bf16.msra.mxu0 0
    %551 = vmatprep.subr.bf16.mxu0 0
    %552 = vmatpush1.bf16.msra.mxu0 0
    %553 = vmatprep.subr.bf16.mxu0 0
    %554 = vmatpush1.bf16.msra.mxu0 0
    %555 = vmatprep.subr.bf16.mxu0 0
    %556 = vmatpush1.bf16.msra.mxu0 0
    %557 = vmatprep.subr.bf16.mxu0 0
    %558 = vmatpush1.bf16.msra.mxu0 0
    %559 = vmatprep.subr.bf16.mxu0 0
    %560 = vmatpush1.bf16.msra.mxu0 0
    %561 = vmatprep.subr.bf16.mxu0 0
    %562 = vmatpush1.bf16.msra.mxu0 0
    %563 = vmatprep.subr.bf16.mxu0 0
    %564 = vmatpush1.bf16.msra.mxu0 0
    %565 = vmatprep.subr.bf16.mxu0 0
    %566 = vmatpush1.bf16.msra.mxu0 0
    %567 = vmatprep.subr.bf16.mxu0 0
    %568 = vmatpush1.bf16.msra.mxu0 0
    %569 = vmatprep.subr.bf16.mxu0 0
    %570 = vmatpush1.bf16.msra.mxu0 0
    %571 = vmatprep.subr.bf16.mxu0 0
    %572 = vmatpush1.bf16.msra.mxu0 0
    %573 = vmatprep.subr.bf16.mxu0 0
    %574 = vmatpush1.bf16.msra.mxu0 0
    %575 = vmatprep.subr.bf16.mxu0 0
    %576 = vmatpush1.bf16.msra.mxu0 0
    %577 = vmatprep.subr.bf16.mxu0 0
    %578 = vmatpush1.bf16.msra.mxu0 0
    %579 = vmatprep.mubr.bf16.mxu0 0
    %580 = vmatmul.mubr.bf16.gmra.mrb[0].mxu0 %v532
    %v581 = vpop.f32.mrb[0].mxu0
    %v582 = vadd.f32 0.0, %v581
    %v583 = vpop.f32.mrb[0].mxu0
    %v584 = vpop.f32.mrb[0].mxu0
    %v585 = vadd.f32 0.0, %v584
    %v586 = vpop.f32.mrb[0].mxu0
    %587 = vmatprep.mubr.bf16.mxu0 0
    %588 = vmatmul.mubr.bf16.gmra.mrb[0].mxu0 %v535
    %v589 = vpop.f32.mrb[0].mxu0
    %v590 = vadd.f32 0.0, %v589
    %v591 = vpop.f32.mrb[0].mxu0
    %v592 = vpop.f32.mrb[0].mxu0
    %v593 = vadd.f32 0.0, %v592
    %v594 = vpop.f32.mrb[0].mxu0
    %595 = vmatprep.mubr.bf16.mxu0 0
    %596 = vmatmul.mubr.bf16.gmra.mrb[0].mxu0 %v538
    %v597 = vpop.f32.mrb[0].mxu0
    %v598 = vadd.f32 0.0, %v597
    %v599 = vpop.f32.mrb[0].mxu0
    %v600 = vpop.f32.mrb[0].mxu0
    %v601 = vadd.f32 0.0, %v600
    %v602 = vpop.f32.mrb[0].mxu0
    %603 = vmatprep.mubr.bf16.mxu0 0
    %604 = vmatmul.mubr.bf16.gmra.mrb[0].mxu0 %v541
    %v605 = vpop.f32.mrb[0].mxu0
    %v606 = vadd.f32 0.0, %v605
    %v607 = vpop.f32.mrb[0].mxu0
    %v608 = vpop.f32.mrb[0].mxu0
    %v609 = vadd.f32 0.0, %v608
    %v610 = vpop.f32.mrb[0].mxu0
    %611 = vdwg.mxu0
    %612 = vrot.lane.b32.xlu0 %v330, 64
    %v613 = vpop.permute.xlu0 %612
    %614 = vrot.lane.b32.xlu0 %v333, 64
    %v615 = vpop.permute.xlu0 %614
    %616 = vrot.lane.b32.xlu0 %v338, 64
    %v617 = vpop.permute.xlu0 %616
    %618 = vrot.lane.b32.xlu0 %v341, 64
    %v619 = vpop.permute.xlu0 %618
    %v624 = vmul.f32 %v582, %v613
    %v625 = vmul.f32 %v585, %v615
    %v626 = vmul.f32 %v590, %v617
    %v627 = vmul.f32 %v593, %v619
    %v628 = vmul.f32 %v598, %v613
    %v629 = vmul.f32 %v601, %v615
    %v630 = vmul.f32 %v606, %v617
    %v631 = vmul.f32 %v609, %v619
    %v632 = vsel %vm288, %v624, 0.0
    %v633 = vsel %vm288, %v626, 0.0
    %v634 = vadd.f32 %v632, %v633
    %v635 = vsel %vm288, %v625, 0.0
    %v636 = vsel %vm288, %v627, 0.0
    %v637 = vadd.f32 %v635, %v636
    %v638 = vsel %vm288, %v628, 0.0
    %v639 = vsel %vm288, %v630, 0.0
    %v640 = vadd.f32 %v638, %v639
    %v641 = vsel %vm288, %v629, 0.0
    %v642 = vsel %vm288, %v631, 0.0
    %v643 = vadd.f32 %v641, %v642
    %v644 = vpack.c.bf16 %v637, %v634
    %v645 = vpack.c.bf16 %v643, %v640
    %v646 = vld [vmem:[#allocation8] sm:$0xf]
    %v647 = vld [vmem:[#allocation8 + $0x4] sm:$0xf]
    %v648 = vld [vmem:[#allocation8 + $0x8] sm:$0xf]
    %v649 = vld [vmem:[#allocation8 + $0xc] sm:$0xf]
    %v650 = vld [vmem:[#allocation10] sm:$0x1]
    %v652 = vlaneseq
    %v653 = vshrl.u32 %v652, 7
    %v654 = vsub.s32 0, %v653
    %v655 = vrot.slane %v650, %v654
    %v661 = vunpack.c.l.b16 %v646
    %v662 = vunpack.c.l.b16 %v647
    %v663 = vunpack.c.l.b16 %v648
    %v664 = vunpack.c.l.b16 %v649
    %v665 = vpack.c.b16 %v662, %v661
    %v666 = vpack.c.b16 %v664, %v663
    %v670 = vsel %vm288, %v644, 0
    %v673 = vsel %vm288, %v645, 0
    %675 = vmatprep.subr.bf16.mxu0 0
    %676 = vmatpush1.bf16.msra.mxu0 %v665
    %677 = vmatprep.subr.bf16.mxu0 0
    %678 = vmatpush1.bf16.msra.mxu0 %v666
    %679 = vmatprep.subr.bf16.mxu0 0
    %680 = vmatpush1.bf16.msra.mxu0 0
    %681 = vmatprep.subr.bf16.mxu0 0
    %682 = vmatpush1.bf16.msra.mxu0 0
    %683 = vmatprep.subr.bf16.mxu0 0
    %684 = vmatpush1.bf16.msra.mxu0 0
    %685 = vmatprep.subr.bf16.mxu0 0
    %686 = vmatpush1.bf16.msra.mxu0 0
    %687 = vmatprep.subr.bf16.mxu0 0
    %688 = vmatpush1.bf16.msra.mxu0 0
    %689 = vmatprep.subr.bf16.mxu0 0
    %690 = vmatpush1.bf16.msra.mxu0 0
    %691 = vmatprep.subr.bf16.mxu0 0
    %692 = vmatpush1.bf16.msra.mxu0 0
    %693 = vmatprep.subr.bf16.mxu0 0
    %694 = vmatpush1.bf16.msra.mxu0 0
    %695 = vmatprep.subr.bf16.mxu0 0
    %696 = vmatpush1.bf16.msra.mxu0 0
    %697 = vmatprep.subr.bf16.mxu0 0
    %698 = vmatpush1.bf16.msra.mxu0 0
    %699 = vmatprep.subr.bf16.mxu0 0
    %700 = vmatpush1.bf16.msra.mxu0 0
    %701 = vmatprep.subr.bf16.mxu0 0
    %702 = vmatpush1.bf16.msra.mxu0 0
    %703 = vmatprep.subr.bf16.mxu0 0
    %704 = vmatpush1.bf16.msra.mxu0 0
    %705 = vmatprep.subr.bf16.mxu0 0
    %706 = vmatpush1.bf16.msra.mxu0 0
    %707 = vmatprep.mubr.bf16.mxu0 0
    %708 = vmatmul.mubr.bf16.gmra.mrb[0].mxu0 %v670
    %v709 = vpop.f32.mrb[0].mxu0
    %v710 = vadd.f32 %v655, %v709
    %v711 = vpop.f32.mrb[0].mxu0
    %v712 = vpop.f32.mrb[0].mxu0
    %v713 = vadd.f32 %v655, %v712
    %v714 = vpop.f32.mrb[0].mxu0
    %715 = vmatprep.mubr.bf16.mxu0 0
    %716 = vmatmul.mubr.bf16.gmra.mrb[0].mxu0 %v673
    %v717 = vpop.f32.mrb[0].mxu0
    %v718 = vadd.f32 %v655, %v717
    %v719 = vpop.f32.mrb[0].mxu0
    %v720 = vpop.f32.mrb[0].mxu0
    %v721 = vadd.f32 %v655, %v720
    %v722 = vpop.f32.mrb[0].mxu0
    %723 = vdwg.mxu0
    %v724 = vadd.f32 %v259, %v710
    %v725 = vadd.f32 %v260, %v713
    %v726 = vadd.f32 %v261, %v718
    %v727 = vadd.f32 %v262, %v721
    %v728 = vld [vmem:[#allocation13] sm:$0x1]
    %v729 = vld [vmem:[#allocation14] sm:$0x1]
    %v730 = vsel %vm288, %v724, 0.0
    %731 = vadd.xlane.f32.xlu0 %v730
    %v732 = vpop.xlane.xlu0 %731
    %v733 = vsel %vm288, %v725, 0.0
    %734 = vadd.xlane.f32.xlu0 %v733
    %v735 = vpop.xlane.xlu0 %734
    %v736 = vsel %vm288, %v726, 0.0
    %737 = vadd.xlane.f32.xlu0 %v736
    %v738 = vpop.xlane.xlu0 %737
    %v739 = vsel %vm288, %v727, 0.0
    %740 = vadd.xlane.f32.xlu0 %v739
    %v741 = vpop.xlane.xlu0 %740
    %v742 = vrcp.pop 32.0
    %v743 = vmul.f32 %v732, %v742
    %v744 = vmul.f32 %v735, %v742
    %v745 = vmul.f32 %v738, %v742
    %v746 = vmul.f32 %v741, %v742
    %v747 = vsub.f32 %v724, %v743
    %v748 = vsub.f32 %v725, %v744
    %v749 = vsub.f32 %v726, %v745
    %v750 = vsub.f32 %v727, %v746
    %v751 = vmul.f32 %v747, %v747
    %v752 = vmul.f32 %v748, %v748
    %v753 = vmul.f32 %v749, %v749
    %v754 = vmul.f32 %v750, %v750
    %v755 = vsel %vm288, %v751, 0.0
    %756 = vadd.xlane.f32.xlu0 %v755
    %v757 = vpop.xlane.xlu0 %756
    %v758 = vsel %vm288, %v752, 0.0
    %759 = vadd.xlane.f32.xlu0 %v758
    %v760 = vpop.xlane.xlu0 %759
    %v761 = vsel %vm288, %v753, 0.0
    %762 = vadd.xlane.f32.xlu0 %v761
    %v763 = vpop.xlane.xlu0 %762
    %v764 = vsel %vm288, %v754, 0.0
    %765 = vadd.xlane.f32.xlu0 %v764
    %v766 = vpop.xlane.xlu0 %765
    %v767 = vmul.f32 %v757, %v742
    %v768 = vmul.f32 %v760, %v742
    %v769 = vmul.f32 %v763, %v742
    %v770 = vmul.f32 %v766, %v742
    %v771 = vadd.f32 %v767, 1e-05
    %v772 = vadd.f32 %v768, 1e-05
    %v773 = vadd.f32 %v769, 1e-05
    %v774 = vadd.f32 %v770, 1e-05
    %v775 = vrsqrt.pop %v771
    %v776 = vrsqrt.pop %v772
    %v777 = vrsqrt.pop %v773
    %v778 = vrsqrt.pop %v774
    %v779 = vmul.f32 %v747, %v775
    %v780 = vmul.f32 %v748, %v776
    %v781 = vmul.f32 %v749, %v777
    %v782 = vmul.f32 %v750, %v778
    %v784 = vlaneseq
    %v785 = vshrl.u32 %v784, 7
    %v786 = vsub.s32 0, %v785
    %v787 = vrot.slane %v728, %v786
    %v789 = vmul.f32 %v779, %v787
    %v790 = vmul.f32 %v780, %v787
    %v791 = vmul.f32 %v781, %v787
    %v792 = vmul.f32 %v782, %v787
    %v794 = vlaneseq
    %v795 = vshrl.u32 %v794, 7
    %v796 = vsub.s32 0, %v795
    %v797 = vrot.slane %v729, %v796
    %v799 = vadd.f32 %v789, %v797
    %v800 = vadd.f32 %v790, %v797
    %v801 = vadd.f32 %v791, %v797
    %v802 = vadd.f32 %v792, %v797
    %v803 = vpack.c.bf16 %v800, %v799
    %v804 = vpack.c.bf16 %v802, %v801
    %v805 = vld [vmem:[%s6] sm:$0xf]
    %v806 = vld [vmem:[%s6 + $0x4] sm:$0xf]
    %v807 = vld [vmem:[%s6 + $0x8] sm:$0xf]
    %v808 = vld [vmem:[%s6 + $0xc] sm:$0xf]
    %v809 = vld [vmem:[#allocation11] sm:$0x1]
    %v811 = vlaneseq
    %v812 = vshrl.u32 %v811, 7
    %v813 = vsub.s32 0, %v812
    %v814 = vrot.slane %v809, %v813
    %v820 = vunpack.c.l.b16 %v805
    %v821 = vunpack.c.l.b16 %v806
    %v822 = vunpack.c.l.b16 %v807
    %v823 = vunpack.c.l.b16 %v808
    %v824 = vpack.c.b16 %v821, %v820
    %v825 = vpack.c.b16 %v823, %v822
    %v829 = vsel %vm288, %v803, 0
    %v832 = vsel %vm288, %v804, 0
    %834 = vmatprep.subr.bf16.mxu0 0
    %835 = vmatpush1.bf16.msra.mxu0 %v824
    %836 = vmatprep.subr.bf16.mxu0 0
    %837 = vmatpush1.bf16.msra.mxu0 %v825
    %838 = vmatprep.subr.bf16.mxu0 0
    %839 = vmatpush1.bf16.msra.mxu0 0
    %840 = vmatprep.subr.bf16.mxu0 0
    %841 = vmatpush1.bf16.msra.mxu0 0
    %842 = vmatprep.subr.bf16.mxu0 0
    %843 = vmatpush1.bf16.msra.mxu0 0
    %844 = vmatprep.subr.bf16.mxu0 0
    %845 = vmatpush1.bf16.msra.mxu0 0
    %846 = vmatprep.subr.bf16.mxu0 0
    %847 = vmatpush1.bf16.msra.mxu0 0
    %848 = vmatprep.subr.bf16.mxu0 0
    %849 = vmatpush1.bf16.msra.mxu0 0
    %850 = vmatprep.subr.bf16.mxu0 0
    %851 = vmatpush1.bf16.msra.mxu0 0
    %852 = vmatprep.subr.bf16.mxu0 0
    %853 = vmatpush1.bf16.msra.mxu0 0
    %854 = vmatprep.subr.bf16.mxu0 0
    %855 = vmatpush1.bf16.msra.mxu0 0
    %856 = vmatprep.subr.bf16.mxu0 0
    %857 = vmatpush1.bf16.msra.mxu0 0
    %858 = vmatprep.subr.bf16.mxu0 0
    %859 = vmatpush1.bf16.msra.mxu0 0
    %860 = vmatprep.subr.bf16.mxu0 0
    %861 = vmatpush1.bf16.msra.mxu0 0
    %862 = vmatprep.subr.bf16.mxu0 0
    %863 = vmatpush1.bf16.msra.mxu0 0
    %864 = vmatprep.subr.bf16.mxu0 0
    %865 = vmatpush1.bf16.msra.mxu0 0
    %866 = vmatprep.mubr.bf16.mxu0 0
    %867 = vmatmul.mubr.bf16.gmra.mrb[0].mxu0 %v829
    %v868 = vpop.f32.mrb[0].mxu0
    %v869 = vadd.f32 %v814, %v868
    %v870 = vpop.f32.mrb[0].mxu0
    %v871 = vpop.f32.mrb[0].mxu0
    %v872 = vadd.f32 %v814, %v871
    %v873 = vpop.f32.mrb[0].mxu0
    %874 = vmatprep.mubr.bf16.mxu0 0
    %875 = vmatmul.mubr.bf16.gmra.mrb[0].mxu0 %v832
    %v876 = vpop.f32.mrb[0].mxu0
    %v877 = vadd.f32 %v814, %v876
    %v878 = vpop.f32.mrb[0].mxu0
    %v879 = vpop.f32.mrb[0].mxu0
    %v880 = vadd.f32 %v814, %v879
    %v881 = vpop.f32.mrb[0].mxu0
    %882 = vdwg.mxu0
    %v883 = vmul.f32 %v869, 0.5
    %v884 = vmul.f32 %v872, 0.5
    %v885 = vmul.f32 %v877, 0.5
    %v886 = vmul.f32 %v880, 0.5
    %v887 = vmul.f32 %v869, %v869
    %v888 = vmul.f32 %v872, %v872
    %v889 = vmul.f32 %v877, %v877
    %v890 = vmul.f32 %v880, %v880
    %v891 = vmul.f32 %v887, %v869
    %v892 = vmul.f32 %v888, %v872
    %v893 = vmul.f32 %v889, %v877
    %v894 = vmul.f32 %v890, %v880
    %v895 = vmul.f32 %v891, 0.044715
    %v896 = vmul.f32 %v892, 0.044715
    %v897 = vmul.f32 %v893, 0.044715
    %v898 = vmul.f32 %v894, 0.044715
    %v899 = vadd.f32 %v869, %v895
    %v900 = vadd.f32 %v872, %v896
    %v901 = vadd.f32 %v877, %v897
    %v902 = vadd.f32 %v880, %v898
    %v903 = vmul.f32 %v899, 0.7978846
    %v904 = vmul.f32 %v900, 0.7978846
    %v905 = vmul.f32 %v901, 0.7978846
    %v906 = vmul.f32 %v902, 0.7978846
    %v907 = vtanh.pop %v903
    %v908 = vtanh.pop %v904
    %v909 = vtanh.pop %v905
    %v910 = vtanh.pop %v906
    %v911 = vadd.f32 %v907, 1.0
    %v912 = vadd.f32 %v908, 1.0
    %v913 = vadd.f32 %v909, 1.0
    %v914 = vadd.f32 %v910, 1.0
    %v915 = vmul.f32 %v883, %v911
    %v916 = vmul.f32 %v884, %v912
    %v917 = vmul.f32 %v885, %v913
    %v918 = vmul.f32 %v886, %v914
    %v919 = vpack.c.bf16 %v916, %v915
    %v920 = vpack.c.bf16 %v918, %v917
    %s921 = scalar_lea.vmem %s6, 16
    %v922 = vld [vmem:[%s921] sm:$0xf]
    %v923 = vld [vmem:[%s921 + $0x4] sm:$0xf]
    %v924 = vld [vmem:[%s921 + $0x8] sm:$0xf]
    %v925 = vld [vmem:[%s921 + $0xc] sm:$0xf]
    %s926 = scalar_lea.vmem [#allocation11], 1
    %v927 = vld [vmem:[%s926] sm:$0x1]
    %v929 = vlaneseq
    %v930 = vshrl.u32 %v929, 7
    %v931 = vsub.s32 0, %v930
    %v932 = vrot.slane %v927, %v931
    %v938 = vunpack.c.l.b16 %v922
    %v939 = vunpack.c.l.b16 %v923
    %v940 = vunpack.c.l.b16 %v924
    %v941 = vunpack.c.l.b16 %v925
    %v942 = vpack.c.b16 %v939, %v938
    %v943 = vpack.c.b16 %v941, %v940
    %v947 = vsel %vm288, %v919, 0
    %v950 = vsel %vm288, %v920, 0
    %952 = vmatprep.subr.bf16.mxu0 0
    %953 = vmatpush1.bf16.msra.mxu0 %v942
    %954 = vmatprep.subr.bf16.mxu0 0
    %955 = vmatpush1.bf16.msra.mxu0 %v943
    %956 = vmatprep.subr.bf16.mxu0 0
    %957 = vmatpush1.bf16.msra.mxu0 0
    %958 = vmatprep.subr.bf16.mxu0 0
    %959 = vmatpush1.bf16.msra.mxu0 0
    %960 = vmatprep.subr.bf16.mxu0 0
    %961 = vmatpush1.bf16.msra.mxu0 0
    %962 = vmatprep.subr.bf16.mxu0 0
    %963 = vmatpush1.bf16.msra.mxu0 0
    %964 = vmatprep.subr.bf16.mxu0 0
    %965 = vmatpush1.bf16.msra.mxu0 0
    %966 = vmatprep.subr.bf16.mxu0 0
    %967 = vmatpush1.bf16.msra.mxu0 0
    %968 = vmatprep.subr.bf16.mxu0 0
    %969 = vmatpush1.bf16.msra.mxu0 0
    %970 = vmatprep.subr.bf16.mxu0 0
    %971 = vmatpush1.bf16.msra.mxu0 0
    %972 = vmatprep.subr.bf16.mxu0 0
    %973 = vmatpush1.bf16.msra.mxu0 0
    %974 = vmatprep.subr.bf16.mxu0 0
    %975 = vmatpush1.bf16.msra.mxu0 0
    %976 = vmatprep.subr.bf16.mxu0 0
    %977 = vmatpush1.bf16.msra.mxu0 0
    %978 = vmatprep.subr.bf16.mxu0 0
    %979 = vmatpush1.bf16.msra.mxu0 0
    %980 = vmatprep.subr.bf16.mxu0 0
    %981 = vmatpush1.bf16.msra.mxu0 0
    %982 = vmatprep.subr.bf16.mxu0 0
    %983 = vmatpush1.bf16.msra.mxu0 0
    %984 = vmatprep.mubr.bf16.mxu0 0
    %985 = vmatmul.mubr.bf16.gmra.mrb[0].mxu0 %v947
    %v986 = vpop.f32.mrb[0].mxu0
    %v987 = vadd.f32 %v932, %v986
    %v988 = vpop.f32.mrb[0].mxu0
    %v989 = vpop.f32.mrb[0].mxu0
    %v990 = vadd.f32 %v932, %v989
    %v991 = vpop.f32.mrb[0].mxu0
    %992 = vmatprep.mubr.bf16.mxu0 0
    %993 = vmatmul.mubr.bf16.gmra.mrb[0].mxu0 %v950
    %v994 = vpop.f32.mrb[0].mxu0
    %v995 = vadd.f32 %v932, %v994
    %v996 = vpop.f32.mrb[0].mxu0
    %v997 = vpop.f32.mrb[0].mxu0
    %v998 = vadd.f32 %v932, %v997
    %v999 = vpop.f32.mrb[0].mxu0
    %1000 = vdwg.mxu0
    %v1001 = vmul.f32 %v987, 0.5
    %v1002 = vmul.f32 %v990, 0.5
    %v1003 = vmul.f32 %v995, 0.5
    %v1004 = vmul.f32 %v998, 0.5
    %v1005 = vmul.f32 %v987, %v987
    %v1006 = vmul.f32 %v990, %v990
    %v1007 = vmul.f32 %v995, %v995
    %v1008 = vmul.f32 %v998, %v998
    %v1009 = vmul.f32 %v1005, %v987
    %v1010 = vmul.f32 %v1006, %v990
    %v1011 = vmul.f32 %v1007, %v995
    %v1012 = vmul.f32 %v1008, %v998
    %v1013 = vmul.f32 %v1009, 0.044715
    %v1014 = vmul.f32 %v1010, 0.044715
    %v1015 = vmul.f32 %v1011, 0.044715
    %v1016 = vmul.f32 %v1012, 0.044715
    %v1017 = vadd.f32 %v987, %v1013
    %v1018 = vadd.f32 %v990, %v1014
    %v1019 = vadd.f32 %v995, %v1015
    %v1020 = vadd.f32 %v998, %v1016
    %v1021 = vmul.f32 %v1017, 0.7978846
    %v1022 = vmul.f32 %v1018, 0.7978846
    %v1023 = vmul.f32 %v1019, 0.7978846
    %v1024 = vmul.f32 %v1020, 0.7978846
    %v1025 = vtanh.pop %v1021
    %v1026 = vtanh.pop %v1022
    %v1027 = vtanh.pop %v1023
    %v1028 = vtanh.pop %v1024
    %v1029 = vadd.f32 %v1025, 1.0
    %v1030 = vadd.f32 %v1026, 1.0
    %v1031 = vadd.f32 %v1027, 1.0
    %v1032 = vadd.f32 %v1028, 1.0
    %v1033 = vmul.f32 %v1001, %v1029
    %v1034 = vmul.f32 %v1002, %v1030
    %v1035 = vmul.f32 %v1003, %v1031
    %v1036 = vmul.f32 %v1004, %v1032
    %v1037 = vpack.c.bf16 %v1034, %v1033
    %v1038 = vpack.c.bf16 %v1036, %v1035
    %s1039 = scalar_lea.vmem %s6, 32
    %v1040 = vld [vmem:[%s1039] sm:$0xf]
    %v1041 = vld [vmem:[%s1039 + $0x4] sm:$0xf]
    %v1042 = vld [vmem:[%s1039 + $0x8] sm:$0xf]
    %v1043 = vld [vmem:[%s1039 + $0xc] sm:$0xf]
    %s1044 = scalar_lea.vmem [#allocation11], 2
    %v1045 = vld [vmem:[%s1044] sm:$0x1]
    %v1047 = vlaneseq
    %v1048 = vshrl.u32 %v1047, 7
    %v1049 = vsub.s32 0, %v1048
    %v1050 = vrot.slane %v1045, %v1049
    %v1056 = vunpack.c.l.b16 %v1040
    %v1057 = vunpack.c.l.b16 %v1041
    %v1058 = vunpack.c.l.b16 %v1042
    %v1059 = vunpack.c.l.b16 %v1043
    %v1060 = vpack.c.b16 %v1057, %v1056
    %v1061 = vpack.c.b16 %v1059, %v1058
    %v1065 = vsel %vm288, %v1037, 0
    %v1068 = vsel %vm288, %v1038, 0
    %1070 = vmatprep.subr.bf16.mxu0 0
    %1071 = vmatpush1.bf16.msra.mxu0 %v1060
    %1072 = vmatprep.subr.bf16.mxu0 0
    %1073 = vmatpush1.bf16.msra.mxu0 %v1061
    %1074 = vmatprep.subr.bf16.mxu0 0
    %1075 = vmatpush1.bf16.msra.mxu0 0
    %1076 = vmatprep.subr.bf16.mxu0 0
    %1077 = vmatpush1.bf16.msra.mxu0 0
    %1078 = vmatprep.subr.bf16.mxu0 0
    %1079 = vmatpush1.bf16.msra.mxu0 0
    %1080 = vmatprep.subr.bf16.mxu0 0
    %1081 = vmatpush1.bf16.msra.mxu0 0
    %1082 = vmatprep.subr.bf16.mxu0 0
    %1083 = vmatpush1.bf16.msra.mxu0 0
    %1084 = vmatprep.subr.bf16.mxu0 0
    %1085 = vmatpush1.bf16.msra.mxu0 0
    %1086 = vmatprep.subr.bf16.mxu0 0
    %1087 = vmatpush1.bf16.msra.mxu0 0
    %1088 = vmatprep.subr.bf16.mxu0 0
    %1089 = vmatpush1.bf16.msra.mxu0 0
    %1090 = vmatprep.subr.bf16.mxu0 0
    %1091 = vmatpush1.bf16.msra.mxu0 0
    %1092 = vmatprep.subr.bf16.mxu0 0
    %1093 = vmatpush1.bf16.msra.mxu0 0
    %1094 = vmatprep.subr.bf16.mxu0 0
    %1095 = vmatpush1.bf16.msra.mxu0 0
    %1096 = vmatprep.subr.bf16.mxu0 0
    %1097 = vmatpush1.bf16.msra.mxu0 0
    %1098 = vmatprep.subr.bf16.mxu0 0
    %1099 = vmatpush1.bf16.msra.mxu0 0
    %1100 = vmatprep.subr.bf16.mxu0 0
    %1101 = vmatpush1.bf16.msra.mxu0 0
    %1102 = vmatprep.mubr.bf16.mxu0 0
    %1103 = vmatmul.mubr.bf16.gmra.mrb[0].mxu0 %v1065
    %v1104 = vpop.f32.mrb[0].mxu0
    %v1105 = vadd.f32 %v1050, %v1104
    %v1106 = vpop.f32.mrb[0].mxu0
    %v1107 = vpop.f32.mrb[0].mxu0
    %v1108 = vadd.f32 %v1050, %v1107
    %v1109 = vpop.f32.mrb[0].mxu0
    %1110 = vmatprep.mubr.bf16.mxu0 0
    %1111 = vmatmul.mubr.bf16.gmra.mrb[0].mxu0 %v1068
    %v1112 = vpop.f32.mrb[0].mxu0
    %v1113 = vadd.f32 %v1050, %v1112
    %v1114 = vpop.f32.mrb[0].mxu0
    %v1115 = vpop.f32.mrb[0].mxu0
    %v1116 = vadd.f32 %v1050, %v1115
    %v1117 = vpop.f32.mrb[0].mxu0
    %1118 = vdwg.mxu0
    %v1119 = vmul.f32 %v1105, 0.5
    %v1120 = vmul.f32 %v1108, 0.5
    %v1121 = vmul.f32 %v1113, 0.5
    %v1122 = vmul.f32 %v1116, 0.5
    %v1123 = vmul.f32 %v1105, %v1105
    %v1124 = vmul.f32 %v1108, %v1108
    %v1125 = vmul.f32 %v1113, %v1113
    %v1126 = vmul.f32 %v1116, %v1116
    %v1127 = vmul.f32 %v1123, %v1105
    %v1128 = vmul.f32 %v1124, %v1108
    %v1129 = vmul.f32 %v1125, %v1113
    %v1130 = vmul.f32 %v1126, %v1116
    %v1131 = vmul.f32 %v1127, 0.044715
    %v1132 = vmul.f32 %v1128, 0.044715
    %v1133 = vmul.f32 %v1129, 0.044715
    %v1134 = vmul.f32 %v1130, 0.044715
    %v1135 = vadd.f32 %v1105, %v1131
    %v1136 = vadd.f32 %v1108, %v1132
    %v1137 = vadd.f32 %v1113, %v1133
    %v1138 = vadd.f32 %v1116, %v1134
    %v1139 = vmul.f32 %v1135, 0.7978846
    %v1140 = vmul.f32 %v1136, 0.7978846
    %v1141 = vmul.f32 %v1137, 0.7978846
    %v1142 = vmul.f32 %v1138, 0.7978846
    %v1143 = vtanh.pop %v1139
    %v1144 = vtanh.pop %v1140
    %v1145 = vtanh.pop %v1141
    %v1146 = vtanh.pop %v1142
    %v1147 = vadd.f32 %v1143, 1.0
    %v1148 = vadd.f32 %v1144, 1.0
    %v1149 = vadd.f32 %v1145, 1.0
    %v1150 = vadd.f32 %v1146, 1.0
    %v1151 = vmul.f32 %v1119, %v1147
    %v1152 = vmul.f32 %v1120, %v1148
    %v1153 = vmul.f32 %v1121, %v1149
    %v1154 = vmul.f32 %v1122, %v1150
    %v1155 = vpack.c.bf16 %v1152, %v1151
    %v1156 = vpack.c.bf16 %v1154, %v1153
    %s1157 = scalar_lea.vmem %s6, 48
    %v1158 = vld [vmem:[%s1157] sm:$0xf]
    %v1159 = vld [vmem:[%s1157 + $0x4] sm:$0xf]
    %v1160 = vld [vmem:[%s1157 + $0x8] sm:$0xf]
    %v1161 = vld [vmem:[%s1157 + $0xc] sm:$0xf]
    %s1162 = scalar_lea.vmem [#allocation11], 3
    %v1163 = vld [vmem:[%s1162] sm:$0x1]
    %v1165 = vlaneseq
    %v1166 = vshrl.u32 %v1165, 7
    %v1167 = vsub.s32 0, %v1166
    %v1168 = vrot.slane %v1163, %v1167
    %v1174 = vunpack.c.l.b16 %v1158
    %v1175 = vunpack.c.l.b16 %v1159
    %v1176 = vunpack.c.l.b16 %v1160
    %v1177 = vunpack.c.l.b16 %v1161
    %v1178 = vpack.c.b16 %v1175, %v1174
    %v1179 = vpack.c.b16 %v1177, %v1176
    %v1183 = vsel %vm288, %v1155, 0
    %v1186 = vsel %vm288, %v1156, 0
    %1188 = vmatprep.subr.bf16.mxu0 0
    %1189 = vmatpush1.bf16.msra.mxu0 %v1178
    %1190 = vmatprep.subr.bf16.mxu0 0
    %1191 = vmatpush1.bf16.msra.mxu0 %v1179
    %1192 = vmatprep.subr.bf16.mxu0 0
    %1193 = vmatpush1.bf16.msra.mxu0 0
    %1194 = vmatprep.subr.bf16.mxu0 0
    %1195 = vmatpush1.bf16.msra.mxu0 0
    %1196 = vmatprep.subr.bf16.mxu0 0
    %1197 = vmatpush1.bf16.msra.mxu0 0
    %1198 = vmatprep.subr.bf16.mxu0 0
    %1199 = vmatpush1.bf16.msra.mxu0 0
    %1200 = vmatprep.subr.bf16.mxu0 0
    %1201 = vmatpush1.bf16.msra.mxu0 0
    %1202 = vmatprep.subr.bf16.mxu0 0
    %1203 = vmatpush1.bf16.msra.mxu0 0
    %1204 = vmatprep.subr.bf16.mxu0 0
    %1205 = vmatpush1.bf16.msra.mxu0 0
    %1206 = vmatprep.subr.bf16.mxu0 0
    %1207 = vmatpush1.bf16.msra.mxu0 0
    %1208 = vmatprep.subr.bf16.mxu0 0
    %1209 = vmatpush1.bf16.msra.mxu0 0
    %1210 = vmatprep.subr.bf16.mxu0 0
    %1211 = vmatpush1.bf16.msra.mxu0 0
    %1212 = vmatprep.subr.bf16.mxu0 0
    %1213 = vmatpush1.bf16.msra.mxu0 0
    %1214 = vmatprep.subr.bf16.mxu0 0
    %1215 = vmatpush1.bf16.msra.mxu0 0
    %1216 = vmatprep.subr.bf16.mxu0 0
    %1217 = vmatpush1.bf16.msra.mxu0 0
    %1218 = vmatprep.subr.bf16.mxu0 0
    %1219 = vmatpush1.bf16.msra.mxu0 0
    %1220 = vmatprep.mubr.bf16.mxu0 0
    %1221 = vmatmul.mubr.bf16.gmra.mrb[0].mxu0 %v1183
    %v1222 = vpop.f32.mrb[0].mxu0
    %v1223 = vadd.f32 %v1168, %v1222
    %v1224 = vpop.f32.mrb[0].mxu0
    %v1225 = vpop.f32.mrb[0].mxu0
    %v1226 = vadd.f32 %v1168, %v1225
    %v1227 = vpop.f32.mrb[0].mxu0
    %1228 = vmatprep.mubr.bf16.mxu0 0
    %1229 = vmatmul.mubr.bf16.gmra.mrb[0].mxu0 %v1186
    %v1230 = vpop.f32.mrb[0].mxu0
    %v1231 = vadd.f32 %v1168, %v1230
    %v1232 = vpop.f32.mrb[0].mxu0
    %v1233 = vpop.f32.mrb[0].mxu0
    %v1234 = vadd.f32 %v1168, %v1233
    %v1235 = vpop.f32.mrb[0].mxu0
    %1236 = vdwg.mxu0
    %v1237 = vadd.f32 %v259, %v1223
    %v1238 = vadd.f32 %v260, %v1226
    %v1239 = vadd.f32 %v261, %v1231
    %v1240 = vadd.f32 %v262, %v1234
    %v1241 = vld [vmem:[#allocation16] sm:$0x1]
    %v1242 = vld [vmem:[#allocation17] sm:$0x1]
    %v1243 = vsel %vm288, %v1237, 0.0
    %1244 = vadd.xlane.f32.xlu0 %v1243
    %v1245 = vpop.xlane.xlu0 %1244
    %v1246 = vsel %vm288, %v1238, 0.0
    %1247 = vadd.xlane.f32.xlu0 %v1246
    %v1248 = vpop.xlane.xlu0 %1247
    %v1249 = vsel %vm288, %v1239, 0.0
    %1250 = vadd.xlane.f32.xlu0 %v1249
    %v1251 = vpop.xlane.xlu0 %1250
    %v1252 = vsel %vm288, %v1240, 0.0
    %1253 = vadd.xlane.f32.xlu0 %v1252
    %v1254 = vpop.xlane.xlu0 %1253
    %v1255 = vmul.f32 %v1245, %v742
    %v1256 = vmul.f32 %v1248, %v742
    %v1257 = vmul.f32 %v1251, %v742
    %v1258 = vmul.f32 %v1254, %v742
    %v1259 = vsub.f32 %v1237, %v1255
    %v1260 = vsub.f32 %v1238, %v1256
    %v1261 = vsub.f32 %v1239, %v1257
    %v1262 = vsub.f32 %v1240, %v1258
    %v1263 = vmul.f32 %v1259, %v1259
    %v1264 = vmul.f32 %v1260, %v1260
    %v1265 = vmul.f32 %v1261, %v1261
    %v1266 = vmul.f32 %v1262, %v1262
    %v1267 = vsel %vm288, %v1263, 0.0
    %1268 = vadd.xlane.f32.xlu0 %v1267
    %v1269 = vpop.xlane.xlu0 %1268
    %v1270 = vsel %vm288, %v1264, 0.0
    %1271 = vadd.xlane.f32.xlu0 %v1270
    %v1272 = vpop.xlane.xlu0 %1271
    %v1273 = vsel %vm288, %v1265, 0.0
    %1274 = vadd.xlane.f32.xlu0 %v1273
    %v1275 = vpop.xlane.xlu0 %1274
    %v1276 = vsel %vm288, %v1266, 0.0
    %1277 = vadd.xlane.f32.xlu0 %v1276
    %v1278 = vpop.xlane.xlu0 %1277
    %v1279 = vmul.f32 %v1269, %v742
    %v1280 = vmul.f32 %v1272, %v742
    %v1281 = vmul.f32 %v1275, %v742
    %v1282 = vmul.f32 %v1278, %v742
    %v1283 = vadd.f32 %v1279, 1e-05
    %v1284 = vadd.f32 %v1280, 1e-05
    %v1285 = vadd.f32 %v1281, 1e-05
    %v1286 = vadd.f32 %v1282, 1e-05
    %v1287 = vrsqrt.pop %v1283
    %v1288 = vrsqrt.pop %v1284
    %v1289 = vrsqrt.pop %v1285
    %v1290 = vrsqrt.pop %v1286
    %v1291 = vmul.f32 %v1259, %v1287
    %v1292 = vmul.f32 %v1260, %v1288
    %v1293 = vmul.f32 %v1261, %v1289
    %v1294 = vmul.f32 %v1262, %v1290
    %v1296 = vlaneseq
    %v1297 = vshrl.u32 %v1296, 7
    %v1298 = vsub.s32 0, %v1297
    %v1299 = vrot.slane %v1241, %v1298
    %v1301 = vmul.f32 %v1291, %v1299
    %v1302 = vmul.f32 %v1292, %v1299
    %v1303 = vmul.f32 %v1293, %v1299
    %v1304 = vmul.f32 %v1294, %v1299
    %v1306 = vlaneseq
    %v1307 = vshrl.u32 %v1306, 7
    %v1308 = vsub.s32 0, %v1307
    %v1309 = vrot.slane %v1242, %v1308
    %v1311 = vadd.f32 %v1301, %v1309
    %v1312 = vadd.f32 %v1302, %v1309
    %v1313 = vadd.f32 %v1303, %v1309
    %v1314 = vadd.f32 %v1304, %v1309
    %v1315 = vld [vmem:[#allocation19] sm:$0xf]
    %v1316 = vld [vmem:[#allocation19 + $0x4] sm:$0xf]
    %v1317 = vld [vmem:[#allocation19 + $0x8] sm:$0xf]
    %v1318 = vld [vmem:[#allocation19 + $0xc] sm:$0xf]
    %v1319 = vpack.c.bf16 %v1312, %v1311
    %v1320 = vpack.c.bf16 %v1314, %v1313
    %v1325 = vunpack.c.l.b16 %v1315
    %v1326 = vunpack.c.l.b16 %v1316
    %v1327 = vunpack.c.l.b16 %v1317
    %v1328 = vunpack.c.l.b16 %v1318
    %v1329 = vpack.c.b16 %v1326, %v1325
    %v1330 = vpack.c.b16 %v1328, %v1327
    %v1332 = vsel %vm288, %v1329, 0
    %v1335 = vsel %vm288, %v1330, 0
    %1337 = vmatprep.subr.bf16.mxu0 0
    %1338 = vmatpush1.bf16.msra.mxu0 %v1319
    %1339 = vmatprep.subr.bf16.mxu0 0
    %1340 = vmatpush1.bf16.msra.mxu0 %v1320
    %1341 = vmatprep.subr.bf16.mxu0 0
    %1342 = vmatpush1.bf16.msra.mxu0 0
    %1343 = vmatprep.subr.bf16.mxu0 0
    %1344 = vmatpush1.bf16.msra.mxu0 0
    %1345 = vmatprep.subr.bf16.mxu0 0
    %1346 = vmatpush1.bf16.msra.mxu0 0
    %1347 = vmatprep.subr.bf16.mxu0 0
    %1348 = vmatpush1.bf16.msra.mxu0 0
    %1349 = vmatprep.subr.bf16.mxu0 0
    %1350 = vmatpush1.bf16.msra.mxu0 0
    %1351 = vmatprep.subr.bf16.mxu0 0
    %1352 = vmatpush1.bf16.msra.mxu0 0
    %1353 = vmatprep.subr.bf16.mxu0 0
    %1354 = vmatpush1.bf16.msra.mxu0 0
    %1355 = vmatprep.subr.bf16.mxu0 0
    %1356 = vmatpush1.bf16.msra.mxu0 0
    %1357 = vmatprep.subr.bf16.mxu0 0
    %1358 = vmatpush1.bf16.msra.mxu0 0
    %1359 = vmatprep.subr.bf16.mxu0 0
    %1360 = vmatpush1.bf16.msra.mxu0 0
    %1361 = vmatprep.subr.bf16.mxu0 0
    %1362 = vmatpush1.bf16.msra.mxu0 0
    %1363 = vmatprep.subr.bf16.mxu0 0
    %1364 = vmatpush1.bf16.msra.mxu0 0
    %1365 = vmatprep.subr.bf16.mxu0 0
    %1366 = vmatpush1.bf16.msra.mxu0 0
    %1367 = vmatprep.subr.bf16.mxu0 0
    %1368 = vmatpush1.bf16.msra.mxu0 0
    %1369 = vmatprep.mubr.bf16.mxu0 0
    %1370 = vmatmul.mubr.bf16.gmra.mrb[0].mxu0 %v1332
    %v1371 = vpop.f32.mrb[0].mxu0
    %v1372 = vadd.f32 0.0, %v1371
    %v1373 = vpop.f32.mrb[0].mxu0
    %v1374 = vpop.f32.mrb[0].mxu0
    %v1375 = vadd.f32 0.0, %v1374
    %v1376 = vpop.f32.mrb[0].mxu0
    %1377 = vmatprep.mubr.bf16.mxu0 0
    %1378 = vmatmul.mubr.bf16.gmra.mrb[0].mxu0 %v1335
    %v1379 = vpop.f32.mrb[0].mxu0
    %v1380 = vadd.f32 0.0, %v1379
    %v1381 = vpop.f32.mrb[0].mxu0
    %v1382 = vpop.f32.mrb[0].mxu0
    %v1383 = vadd.f32 0.0, %v1382
    %v1384 = vpop.f32.mrb[0].mxu0
    %1385 = vdwg.mxu0
    %v1386 = vld [vmem:[#allocation20] sm:$0x1]
    %v1387 = vld [vmem:[#allocation20 + $0x1] sm:$0x1]
    %v1388 = vld [vmem:[#allocation20 + $0x2] sm:$0x1]
    %v1389 = vld [vmem:[#allocation20 + $0x3] sm:$0x1]
    %v1390 = vld [vmem:[#allocation20 + $0x4] sm:$0x1]
    %v1391 = vld [vmem:[#allocation20 + $0x5] sm:$0x1]
    %v1392 = vld [vmem:[#allocation20 + $0x6] sm:$0x1]
    %v1393 = vld [vmem:[#allocation20 + $0x7] sm:$0x1]
    %v1394 = vld [vmem:[#allocation20 + $0x8] sm:$0x1]
    %v1395 = vld [vmem:[#allocation20 + $0x9] sm:$0x1]
    %v1396 = vld [vmem:[#allocation20 + $0xa] sm:$0x1]
    %v1397 = vld [vmem:[#allocation20 + $0xb] sm:$0x1]
    %v1398 = vld [vmem:[#allocation20 + $0xc] sm:$0x1]
    %v1399 = vld [vmem:[#allocation20 + $0xd] sm:$0x1]
    %v1400 = vld [vmem:[#allocation20 + $0xe] sm:$0x1]
    %v1401 = vld [vmem:[#allocation20 + $0xf] sm:$0x1]
    %v1402 = vld [vmem:[#allocation20 + $0x10] sm:$0x1]
    %v1403 = vld [vmem:[#allocation20 + $0x11] sm:$0x1]
    %v1404 = vld [vmem:[#allocation20 + $0x12] sm:$0x1]
    %v1405 = vld [vmem:[#allocation20 + $0x13] sm:$0x1]
    %v1426 = vlaneseq
    %v1427 = vshrl.u32 %v1426, 7
    %v1428 = vsub.s32 0, %v1427
    %v1429 = vrot.slane %v1386, %v1428
    %v1430 = vlaneseq
    %v1431 = vshrl.u32 %v1430, 7
    %v1432 = vsub.s32 0, %v1431
    %v1433 = vrot.slane %v1387, %v1432
    %v1434 = vlaneseq
    %v1435 = vshrl.u32 %v1434, 7
    %v1436 = vsub.s32 0, %v1435
    %v1437 = vrot.slane %v1388, %v1436
    %v1438 = vlaneseq
    %v1439 = vshrl.u32 %v1438, 7
    %v1440 = vsub.s32 0, %v1439
    %v1441 = vrot.slane %v1389, %v1440
    %v1442 = vlaneseq
    %v1443 = vshrl.u32 %v1442, 7
    %v1444 = vsub.s32 0, %v1443
    %v1445 = vrot.slane %v1390, %v1444
    %v1446 = vlaneseq
    %v1447 = vshrl.u32 %v1446, 7
    %v1448 = vsub.s32 0, %v1447
    %v1449 = vrot.slane %v1391, %v1448
    %v1450 = vlaneseq
    %v1451 = vshrl.u32 %v1450, 7
    %v1452 = vsub.s32 0, %v1451
    %v1453 = vrot.slane %v1392, %v1452
    %v1454 = vlaneseq
    %v1455 = vshrl.u32 %v1454, 7
    %v1456 = vsub.s32 0, %v1455
    %v1457 = vrot.slane %v1393, %v1456
    %v1458 = vlaneseq
    %v1459 = vshrl.u32 %v1458, 7
    %v1460 = vsub.s32 0, %v1459
    %v1461 = vrot.slane %v1394, %v1460
    %v1462 = vlaneseq
    %v1463 = vshrl.u32 %v1462, 7
    %v1464 = vsub.s32 0, %v1463
    %v1465 = vrot.slane %v1395, %v1464
    %v1466 = vlaneseq
    %v1467 = vshrl.u32 %v1466, 7
    %v1468 = vsub.s32 0, %v1467
    %v1469 = vrot.slane %v1396, %v1468
    %v1470 = vlaneseq
    %v1471 = vshrl.u32 %v1470, 7
    %v1472 = vsub.s32 0, %v1471
    %v1473 = vrot.slane %v1397, %v1472
    %v1474 = vlaneseq
    %v1475 = vshrl.u32 %v1474, 7
    %v1476 = vsub.s32 0, %v1475
    %v1477 = vrot.slane %v1398, %v1476
    %v1478 = vlaneseq
    %v1479 = vshrl.u32 %v1478, 7
    %v1480 = vsub.s32 0, %v1479
    %v1481 = vrot.slane %v1399, %v1480
    %v1482 = vlaneseq
    %v1483 = vshrl.u32 %v1482, 7
    %v1484 = vsub.s32 0, %v1483
    %v1485 = vrot.slane %v1400, %v1484
    %v1486 = vlaneseq
    %v1487 = vshrl.u32 %v1486, 7
    %v1488 = vsub.s32 0, %v1487
    %v1489 = vrot.slane %v1401, %v1488
    %v1490 = vlaneseq
    %v1491 = vshrl.u32 %v1490, 7
    %v1492 = vsub.s32 0, %v1491
    %v1493 = vrot.slane %v1402, %v1492
    %v1494 = vlaneseq
    %v1495 = vshrl.u32 %v1494, 7
    %v1496 = vsub.s32 0, %v1495
    %v1497 = vrot.slane %v1403, %v1496
    %v1498 = vlaneseq
    %v1499 = vshrl.u32 %v1498, 7
    %v1500 = vsub.s32 0, %v1499
    %v1501 = vrot.slane %v1404, %v1500
    %v1502 = vlaneseq
    %v1503 = vshrl.u32 %v1502, 7
    %v1504 = vsub.s32 0, %v1503
    %v1505 = vrot.slane %v1405, %v1504
    %v1526 = vmul.f32 %v1429, %v1372
    %v1527 = vmul.f32 %v1433, %v1372
    %v1528 = vmul.f32 %v1437, %v1372
    %v1529 = vmul.f32 %v1441, %v1372
    %v1530 = vmul.f32 %v1445, %v1372
    %v1531 = vmul.f32 %v1449, %v1375
    %v1532 = vmul.f32 %v1453, %v1375
    %v1533 = vmul.f32 %v1457, %v1375
    %v1534 = vmul.f32 %v1461, %v1375
    %v1535 = vmul.f32 %v1465, %v1375
    %v1536 = vmul.f32 %v1469, %v1380
    %v1537 = vmul.f32 %v1473, %v1380
    %v1538 = vmul.f32 %v1477, %v1380
    %v1539 = vmul.f32 %v1481, %v1380
    %v1540 = vmul.f32 %v1485, %v1380
    %v1541 = vmul.f32 %v1489, %v1383
    %v1542 = vmul.f32 %v1493, %v1383
    %v1543 = vmul.f32 %v1497, %v1383
    %v1544 = vmul.f32 %v1501, %v1383
    %v1545 = vmul.f32 %v1505, %v1383
    %v1546 = vsel %vm288, %v1526, 0.0
    %v1547 = vsel %vm288, %v1531, 0.0
    %v1548 = vadd.f32 %v1546, %v1547
    %v1549 = vsel %vm288, %v1536, 0.0
    %v1550 = vadd.f32 %v1548, %v1549
    %v1551 = vsel %vm288, %v1541, 0.0
    %v1552 = vadd.f32 %v1550, %v1551
    %v1553 = vsel %vm288, %v1527, 0.0
    %v1554 = vsel %vm288, %v1532, 0.0
    %v1555 = vadd.f32 %v1553, %v1554
    %v1556 = vsel %vm288, %v1537, 0.0
    %v1557 = vadd.f32 %v1555, %v1556
    %v1558 = vsel %vm288, %v1542, 0.0
    %v1559 = vadd.f32 %v1557, %v1558
    %v1560 = vsel %vm288, %v1528, 0.0
    %v1561 = vsel %vm288, %v1533, 0.0
    %v1562 = vadd.f32 %v1560, %v1561
    %v1563 = vsel %vm288, %v1538, 0.0
    %v1564 = vadd.f32 %v1562, %v1563
    %v1565 = vsel %vm288, %v1543, 0.0
    %v1566 = vadd.f32 %v1564, %v1565
    %v1567 = vsel %vm288, %v1529, 0.0
    %v1568 = vsel %vm288, %v1534, 0.0
    %v1569 = vadd.f32 %v1567, %v1568
    %v1570 = vsel %vm288, %v1539, 0.0
    %v1571 = vadd.f32 %v1569, %v1570
    %v1572 = vsel %vm288, %v1544, 0.0
    %v1573 = vadd.f32 %v1571, %v1572
    %v1574 = vsel %vm288, %v1530, 0.0
    %v1575 = vsel %vm288, %v1535, 0.0
    %v1576 = vadd.f32 %v1574, %v1575
    %v1577 = vsel %vm288, %v1540, 0.0
    %v1578 = vadd.f32 %v1576, %v1577
    %v1579 = vsel %vm288, %v1545, 0.0
    %v1580 = vadd.f32 %v1578, %v1579
    %v1581 = vld [vmem:[#allocation22] sm:$0x1]
    %v1582 = vld [vmem:[#allocation22 + $0x1] sm:$0x1]
    %v1583 = vld [vmem:[#allocation22 + $0x2] sm:$0x1]
    %v1584 = vld [vmem:[#allocation22 + $0x3] sm:$0x1]
    %v1585 = vld [vmem:[#allocation22 + $0x4] sm:$0x1]
    %v1591 = vlaneseq
    %v1592 = vshrl.u32 %v1591, 7
    %v1593 = vsub.s32 0, %v1592
    %v1594 = vrot.slane %v1581, %v1593
    %v1595 = vlaneseq
    %v1596 = vshrl.u32 %v1595, 7
    %v1597 = vsub.s32 0, %v1596
    %v1598 = vrot.slane %v1582, %v1597
    %v1599 = vlaneseq
    %v1600 = vshrl.u32 %v1599, 7
    %v1601 = vsub.s32 0, %v1600
    %v1602 = vrot.slane %v1583, %v1601
    %v1603 = vlaneseq
    %v1604 = vshrl.u32 %v1603, 7
    %v1605 = vsub.s32 0, %v1604
    %v1606 = vrot.slane %v1584, %v1605
    %v1607 = vlaneseq
    %v1608 = vshrl.u32 %v1607, 7
    %v1609 = vsub.s32 0, %v1608
    %v1610 = vrot.slane %v1585, %v1609
    %v1616 = vadd.f32 %v1552, %v1594
    %v1617 = vadd.f32 %v1559, %v1598
    %v1618 = vadd.f32 %v1566, %v1602
    %v1619 = vadd.f32 %v1573, %v1606
    %v1620 = vadd.f32 %v1580, %v1610
    %v1621 = vsel %vm288, %v1616, -inf
    %1622 = vmax.xlane.f32.xlu0 %v1621
    %v1623 = vpop.xlane.xlu0 %1622
    %v1624 = vsel %vm288, %v1617, -inf
    %1625 = vmax.xlane.f32.xlu0 %v1624
    %v1626 = vpop.xlane.xlu0 %1625
    %v1627 = vsel %vm288, %v1618, -inf
    %1628 = vmax.xlane.f32.xlu0 %v1627
    %v1629 = vpop.xlane.xlu0 %1628
    %v1630 = vsel %vm288, %v1619, -inf
    %1631 = vmax.xlane.f32.xlu0 %v1630
    %v1632 = vpop.xlane.xlu0 %1631
    %v1633 = vsel %vm288, %v1620, -inf
    %1634 = vmax.xlane.f32.xlu0 %v1633
    %v1635 = vpop.xlane.xlu0 %1634
    %v1636 = vsub.f32 %v1616, %v1623
    %v1637 = vsub.f32 %v1617, %v1626
    %v1638 = vsub.f32 %v1618, %v1629
    %v1639 = vsub.f32 %v1619, %v1632
    %v1640 = vsub.f32 %v1620, %v1635
    %v1641 = vmul.f32 %v1636, 1.442695
    %v1642 = vpow.pop %v1641
    %v1643 = vmul.f32 %v1637, 1.442695
    %v1644 = vpow.pop %v1643
    %v1645 = vmul.f32 %v1638, 1.442695
    %v1646 = vpow.pop %v1645
    %v1647 = vmul.f32 %v1639, 1.442695
    %v1648 = vpow.pop %v1647
    %v1649 = vmul.f32 %v1640, 1.442695
    %v1650 = vpow.pop %v1649
    %v1651 = vsel %vm288, %v1642, 0.0
    %1652 = vadd.xlane.f32.xlu0 %v1651
    %v1653 = vpop.xlane.xlu0 %1652
    %v1654 = vsel %vm288, %v1644, 0.0
    %1655 = vadd.xlane.f32.xlu0 %v1654
    %v1656 = vpop.xlane.xlu0 %1655
    %v1657 = vsel %vm288, %v1646, 0.0
    %1658 = vadd.xlane.f32.xlu0 %v1657
    %v1659 = vpop.xlane.xlu0 %1658
    %v1660 = vsel %vm288, %v1648, 0.0
    %1661 = vadd.xlane.f32.xlu0 %v1660
    %v1662 = vpop.xlane.xlu0 %1661
    %v1663 = vsel %vm288, %v1650, 0.0
    %1664 = vadd.xlane.f32.xlu0 %v1663
    %v1665 = vpop.xlane.xlu0 %1664
    %v1666 = vrcp.pop %v1653
    %v1667 = vrcp.pop %v1656
    %v1668 = vrcp.pop %v1659
    %v1669 = vrcp.pop %v1662
    %v1670 = vrcp.pop %v1665
    %v1671 = vmul.f32 %v1642, %v1666
    %v1672 = vmul.f32 %v1644, %v1667
    %v1673 = vmul.f32 %v1646, %v1668
    %v1674 = vmul.f32 %v1648, %v1669
    %v1675 = vmul.f32 %v1650, %v1670
    %v1676 = vld [vmem:[#allocation23] sm:$0xff]
    %v1677 = vld [vmem:[#allocation23 + $0x8] sm:$0xff]
    %v1678 = vld [vmem:[#allocation23 + $0x10] sm:$0xff]
    %v1679 = vld [vmem:[#allocation23 + $0x18] sm:$0xff]
    %v1680 = vld [vmem:[#allocation23 + $0x20] sm:$0xff]
    %v1681 = vld [vmem:[#allocation23 + $0x28] sm:$0xff]
    %v1682 = vld [vmem:[#allocation23 + $0x30] sm:$0xff]
    %v1683 = vld [vmem:[#allocation23 + $0x38] sm:$0xff]
    %v1684 = vld [vmem:[#allocation23 + $0x40] sm:$0xff]
    %v1685 = vld [vmem:[#allocation23 + $0x48] sm:$0xff]
    %v1686 = vld [vmem:[#allocation23 + $0x50] sm:$0xff]
    %v1687 = vld [vmem:[#allocation23 + $0x58] sm:$0xff]
    %v1688 = vld [vmem:[#allocation23 + $0x60] sm:$0xff]
    %v1689 = vld [vmem:[#allocation23 + $0x68] sm:$0xff]
    %v1690 = vld [vmem:[#allocation23 + $0x70] sm:$0xff]
    %v1691 = vld [vmem:[#allocation23 + $0x78] sm:$0xff]
    %v1692 = vld [vmem:[#allocation23 + $0x80] sm:$0xff]
    %v1693 = vld [vmem:[#allocation23 + $0x88] sm:$0xff]
    %v1694 = vld [vmem:[#allocation23 + $0x90] sm:$0xff]
    %v1695 = vld [vmem:[#allocation23 + $0x98] sm:$0xff]
    %v1696 = vld [vmem:[#allocation23 + $0xa0] sm:$0xff]
    %v1697 = vld [vmem:[#allocation23 + $0xa8] sm:$0xff]
    %v1698 = vld [vmem:[#allocation23 + $0xb0] sm:$0xff]
    %v1699 = vld [vmem:[#allocation23 + $0xb8] sm:$0xff]
    %v1700 = vld [vmem:[#allocation23 + $0xc0] sm:$0xff]
    %v1701 = vld [vmem:[#allocation23 + $0xc8] sm:$0xff]
    %v1702 = vld [vmem:[#allocation23 + $0xd0] sm:$0xff]
    %v1703 = vld [vmem:[#allocation23 + $0xd8] sm:$0xff]
    %v1704 = vld [vmem:[#allocation23 + $0xe0] sm:$0xff]
    %v1705 = vld [vmem:[#allocation23 + $0xe8] sm:$0xff]
    %v1706 = vld [vmem:[#allocation23 + $0xf0] sm:$0xff]
    %v1707 = vld [vmem:[#allocation23 + $0xf8] sm:$0xff]
    %v1708 = vld [vmem:[#allocation23 + $0x100] sm:$0xff]
    %v1709 = vld [vmem:[#allocation23 + $0x108] sm:$0xff]
    %v1710 = vld [vmem:[#allocation23 + $0x110] sm:$0xff]
    %v1711 = vld [vmem:[#allocation23 + $0x118] sm:$0xff]
    %v1712 = vld [vmem:[#allocation23 + $0x120] sm:$0xff]
    %v1713 = vld [vmem:[#allocation23 + $0x128] sm:$0xff]
    %v1714 = vld [vmem:[#allocation23 + $0x130] sm:$0xff]
    %v1715 = vld [vmem:[#allocation23 + $0x138] sm:$0xff]
    %v1716 = vld [vmem:[#allocation23 + $0x140] sm:$0xff]
    %v1717 = vld [vmem:[#allocation23 + $0x148] sm:$0xff]
    %v1718 = vld [vmem:[#allocation23 + $0x150] sm:$0xff]
    %v1719 = vld [vmem:[#allocation23 + $0x158] sm:$0xff]
    %v1720 = vld [vmem:[#allocation23 + $0x160] sm:$0xff]
    %v1721 = vld [vmem:[#allocation23 + $0x168] sm:$0xff]
    %v1722 = vld [vmem:[#allocation23 + $0x170] sm:$0xff]
    %v1723 = vld [vmem:[#allocation23 + $0x178] sm:$0xff]
    %v1724 = vld [vmem:[#allocation23 + $0x180] sm:$0xff]
    %v1725 = vld [vmem:[#allocation23 + $0x188] sm:$0xff]
    %v1726 = vld [vmem:[#allocation23 + $0x190] sm:$0xff]
    %v1727 = vld [vmem:[#allocation23 + $0x198] sm:$0xff]
    %v1728 = vld [vmem:[#allocation23 + $0x1a0] sm:$0xff]
    %v1729 = vld [vmem:[#allocation23 + $0x1a8] sm:$0xff]
    %v1730 = vld [vmem:[#allocation23 + $0x1b0] sm:$0xff]
    %v1731 = vld [vmem:[#allocation23 + $0x1b8] sm:$0xff]
    %v1732 = vld [vmem:[#allocation23 + $0x1c0] sm:$0xff]
    %v1733 = vld [vmem:[#allocation23 + $0x1c8] sm:$0xff]
    %v1734 = vld [vmem:[#allocation23 + $0x1d0] sm:$0xff]
    %v1735 = vld [vmem:[#allocation23 + $0x1d8] sm:$0xff]
    %v1736 = vld [vmem:[#allocation23 + $0x1e0] sm:$0xff]
    %v1737 = vld [vmem:[#allocation23 + $0x1e8] sm:$0xff]
    %v1738 = vld [vmem:[#allocation23 + $0x1f0] sm:$0xff]
    %v1739 = vld [vmem:[#allocation23 + $0x1f8] sm:$0xff]
    %v1740 = vld [vmem:[#allocation23 + $0x200] sm:$0xff]
    %v1741 = vld [vmem:[#allocation23 + $0x208] sm:$0xff]
    %v1742 = vld [vmem:[#allocation23 + $0x210] sm:$0xff]
    %v1743 = vld [vmem:[#allocation23 + $0x218] sm:$0xff]
    %v1744 = vld [vmem:[#allocation23 + $0x220] sm:$0xff]
    %v1745 = vld [vmem:[#allocation23 + $0x228] sm:$0xff]
    %v1746 = vld [vmem:[#allocation23 + $0x230] sm:$0xff]
    %v1747 = vld [vmem:[#allocation23 + $0x238] sm:$0xff]
    %v1748 = vld [vmem:[#allocation23 + $0x240] sm:$0xff]
    %v1749 = vld [vmem:[#allocation23 + $0x248] sm:$0xff]
    %v1750 = vld [vmem:[#allocation23 + $0x250] sm:$0xff]
    %v1751 = vld [vmem:[#allocation23 + $0x258] sm:$0xff]
    %v1752 = vld [vmem:[#allocation23 + $0x260] sm:$0xff]
    %v1753 = vld [vmem:[#allocation23 + $0x268] sm:$0xff]
    %v1754 = vld [vmem:[#allocation23 + $0x270] sm:$0xff]
    %v1755 = vld [vmem:[#allocation23 + $0x278] sm:$0xff]
    %v1756 = vmul.f32 %v1671, %v1676
    %v1757 = vmul.f32 %v1672, %v1677
    %v1758 = vmul.f32 %v1673, %v1678
    %v1759 = vmul.f32 %v1674, %v1679
    %v1760 = vmul.f32 %v1675, %v1680
    %v1761 = vmul.f32 %v1671, %v1681
    %v1762 = vmul.f32 %v1672, %v1682
    %v1763 = vmul.f32 %v1673, %v1683
    %v1764 = vmul.f32 %v1674, %v1684
    %v1765 = vmul.f32 %v1675, %v1685
    %v1766 = vmul.f32 %v1671, %v1686
    %v1767 = vmul.f32 %v1672, %v1687
    %v1768 = vmul.f32 %v1673, %v1688
    %v1769 = vmul.f32 %v1674, %v1689
    %v1770 = vmul.f32 %v1675, %v1690
    %v1771 = vmul.f32 %v1671, %v1691
    %v1772 = vmul.f32 %v1672, %v1692
    %v1773 = vmul.f32 %v1673, %v1693
    %v1774 = vmul.f32 %v1674, %v1694
    %v1775 = vmul.f32 %v1675, %v1695
    %v1776 = vmul.f32 %v1671, %v1696
    %v1777 = vmul.f32 %v1672, %v1697
    %v1778 = vmul.f32 %v1673, %v1698
    %v1779 = vmul.f32 %v1674, %v1699
    %v1780 = vmul.f32 %v1675, %v1700
    %v1781 = vmul.f32 %v1671, %v1701
    %v1782 = vmul.f32 %v1672, %v1702
    %v1783 = vmul.f32 %v1673, %v1703
    %v1784 = vmul.f32 %v1674, %v1704
    %v1785 = vmul.f32 %v1675, %v1705
    %v1786 = vmul.f32 %v1671, %v1706
    %v1787 = vmul.f32 %v1672, %v1707
    %v1788 = vmul.f32 %v1673, %v1708
    %v1789 = vmul.f32 %v1674, %v1709
    %v1790 = vmul.f32 %v1675, %v1710
    %v1791 = vmul.f32 %v1671, %v1711
    %v1792 = vmul.f32 %v1672, %v1712
    %v1793 = vmul.f32 %v1673, %v1713
    %v1794 = vmul.f32 %v1674, %v1714
    %v1795 = vmul.f32 %v1675, %v1715
    %v1796 = vmul.f32 %v1671, %v1716
    %v1797 = vmul.f32 %v1672, %v1717
    %v1798 = vmul.f32 %v1673, %v1718
    %v1799 = vmul.f32 %v1674, %v1719
    %v1800 = vmul.f32 %v1675, %v1720
    %v1801 = vmul.f32 %v1671, %v1721
    %v1802 = vmul.f32 %v1672, %v1722
    %v1803 = vmul.f32 %v1673, %v1723
    %v1804 = vmul.f32 %v1674, %v1724
    %v1805 = vmul.f32 %v1675, %v1725
    %v1806 = vmul.f32 %v1671, %v1726
    %v1807 = vmul.f32 %v1672, %v1727
    %v1808 = vmul.f32 %v1673, %v1728
    %v1809 = vmul.f32 %v1674, %v1729
    %v1810 = vmul.f32 %v1675, %v1730
    %v1811 = vmul.f32 %v1671, %v1731
    %v1812 = vmul.f32 %v1672, %v1732
    %v1813 = vmul.f32 %v1673, %v1733
    %v1814 = vmul.f32 %v1674, %v1734
    %v1815 = vmul.f32 %v1675, %v1735
    %v1816 = vmul.f32 %v1671, %v1736
    %v1817 = vmul.f32 %v1672, %v1737
    %v1818 = vmul.f32 %v1673, %v1738
    %v1819 = vmul.f32 %v1674, %v1739
    %v1820 = vmul.f32 %v1675, %v1740
    %v1821 = vmul.f32 %v1671, %v1741
    %v1822 = vmul.f32 %v1672, %v1742
    %v1823 = vmul.f32 %v1673, %v1743
    %v1824 = vmul.f32 %v1674, %v1744
    %v1825 = vmul.f32 %v1675, %v1745
    %v1826 = vmul.f32 %v1671, %v1746
    %v1827 = vmul.f32 %v1672, %v1747
    %v1828 = vmul.f32 %v1673, %v1748
    %v1829 = vmul.f32 %v1674, %v1749
    %v1830 = vmul.f32 %v1675, %v1750
    %v1831 = vmul.f32 %v1671, %v1751
    %v1832 = vmul.f32 %v1672, %v1752
    %v1833 = vmul.f32 %v1673, %v1753
    %v1834 = vmul.f32 %v1674, %v1754
    %v1835 = vmul.f32 %v1675, %v1755
    %v1836 = vsel %vm288, %v1756, 0.0
    %v1837 = vsel %vm288, %v1757, 0.0
    %v1838 = vadd.f32 %v1836, %v1837
    %v1839 = vsel %vm288, %v1758, 0.0
    %v1840 = vadd.f32 %v1838, %v1839
    %v1841 = vsel %vm288, %v1759, 0.0
    %v1842 = vadd.f32 %v1840, %v1841
    %v1843 = vsel %vm288, %v1760, 0.0
    %v1844 = vadd.f32 %v1842, %v1843
    %v1845 = vsel %vm288, %v1761, 0.0
    %v1846 = vsel %vm288, %v1762, 0.0
    %v1847 = vadd.f32 %v1845, %v1846
    %v1848 = vsel %vm288, %v1763, 0.0
    %v1849 = vadd.f32 %v1847, %v1848
    %v1850 = vsel %vm288, %v1764, 0.0
    %v1851 = vadd.f32 %v1849, %v1850
    %v1852 = vsel %vm288, %v1765, 0.0
    %v1853 = vadd.f32 %v1851, %v1852
    %v1854 = vsel %vm288, %v1766, 0.0
    %v1855 = vsel %vm288, %v1767, 0.0
    %v1856 = vadd.f32 %v1854, %v1855
    %v1857 = vsel %vm288, %v1768, 0.0
    %v1858 = vadd.f32 %v1856, %v1857
    %v1859 = vsel %vm288, %v1769, 0.0
    %v1860 = vadd.f32 %v1858, %v1859
    %v1861 = vsel %vm288, %v1770, 0.0
    %v1862 = vadd.f32 %v1860, %v1861
    %v1863 = vsel %vm288, %v1771, 0.0
    %v1864 = vsel %vm288, %v1772, 0.0
    %v1865 = vadd.f32 %v1863, %v1864
    %v1866 = vsel %vm288, %v1773, 0.0
    %v1867 = vadd.f32 %v1865, %v1866
    %v1868 = vsel %vm288, %v1774, 0.0
    %v1869 = vadd.f32 %v1867, %v1868
    %v1870 = vsel %vm288, %v1775, 0.0
    %v1871 = vadd.f32 %v1869, %v1870
    %v1872 = vsel %vm288, %v1776, 0.0
    %v1873 = vsel %vm288, %v1777, 0.0
    %v1874 = vadd.f32 %v1872, %v1873
    %v1875 = vsel %vm288, %v1778, 0.0
    %v1876 = vadd.f32 %v1874, %v1875
    %v1877 = vsel %vm288, %v1779, 0.0
    %v1878 = vadd.f32 %v1876, %v1877
    %v1879 = vsel %vm288, %v1780, 0.0
    %v1880 = vadd.f32 %v1878, %v1879
    %v1881 = vsel %vm288, %v1781, 0.0
    %v1882 = vsel %vm288, %v1782, 0.0
    %v1883 = vadd.f32 %v1881, %v1882
    %v1884 = vsel %vm288, %v1783, 0.0
    %v1885 = vadd.f32 %v1883, %v1884
    %v1886 = vsel %vm288, %v1784, 0.0
    %v1887 = vadd.f32 %v1885, %v1886
    %v1888 = vsel %vm288, %v1785, 0.0
    %v1889 = vadd.f32 %v1887, %v1888
    %v1890 = vsel %vm288, %v1786, 0.0
    %v1891 = vsel %vm288, %v1787, 0.0
    %v1892 = vadd.f32 %v1890, %v1891
    %v1893 = vsel %vm288, %v1788, 0.0
    %v1894 = vadd.f32 %v1892, %v1893
    %v1895 = vsel %vm288, %v1789, 0.0
    %v1896 = vadd.f32 %v1894, %v1895
    %v1897 = vsel %vm288, %v1790, 0.0
    %v1898 = vadd.f32 %v1896, %v1897
    %v1899 = vsel %vm288, %v1791, 0.0
    %v1900 = vsel %vm288, %v1792, 0.0
    %v1901 = vadd.f32 %v1899, %v1900
    %v1902 = vsel %vm288, %v1793, 0.0
    %v1903 = vadd.f32 %v1901, %v1902
    %v1904 = vsel %vm288, %v1794, 0.0
    %v1905 = vadd.f32 %v1903, %v1904
    %v1906 = vsel %vm288, %v1795, 0.0
    %v1907 = vadd.f32 %v1905, %v1906
    %v1908 = vsel %vm288, %v1796, 0.0
    %v1909 = vsel %vm288, %v1797, 0.0
    %v1910 = vadd.f32 %v1908, %v1909
    %v1911 = vsel %vm288, %v1798, 0.0
    %v1912 = vadd.f32 %v1910, %v1911
    %v1913 = vsel %vm288, %v1799, 0.0
    %v1914 = vadd.f32 %v1912, %v1913
    %v1915 = vsel %vm288, %v1800, 0.0
    %v1916 = vadd.f32 %v1914, %v1915
    %v1917 = vsel %vm288, %v1801, 0.0
    %v1918 = vsel %vm288, %v1802, 0.0
    %v1919 = vadd.f32 %v1917, %v1918
    %v1920 = vsel %vm288, %v1803, 0.0
    %v1921 = vadd.f32 %v1919, %v1920
    %v1922 = vsel %vm288, %v1804, 0.0
    %v1923 = vadd.f32 %v1921, %v1922
    %v1924 = vsel %vm288, %v1805, 0.0
    %v1925 = vadd.f32 %v1923, %v1924
    %v1926 = vsel %vm288, %v1806, 0.0
    %v1927 = vsel %vm288, %v1807, 0.0
    %v1928 = vadd.f32 %v1926, %v1927
    %v1929 = vsel %vm288, %v1808, 0.0
    %v1930 = vadd.f32 %v1928, %v1929
    %v1931 = vsel %vm288, %v1809, 0.0
    %v1932 = vadd.f32 %v1930, %v1931
    %v1933 = vsel %vm288, %v1810, 0.0
    %v1934 = vadd.f32 %v1932, %v1933
    %v1935 = vsel %vm288, %v1811, 0.0
    %v1936 = vsel %vm288, %v1812, 0.0
    %v1937 = vadd.f32 %v1935, %v1936
    %v1938 = vsel %vm288, %v1813, 0.0
    %v1939 = vadd.f32 %v1937, %v1938
    %v1940 = vsel %vm288, %v1814, 0.0
    %v1941 = vadd.f32 %v1939, %v1940
    %v1942 = vsel %vm288, %v1815, 0.0
    %v1943 = vadd.f32 %v1941, %v1942
    %v1944 = vsel %vm288, %v1816, 0.0
    %v1945 = vsel %vm288, %v1817, 0.0
    %v1946 = vadd.f32 %v1944, %v1945
    %v1947 = vsel %vm288, %v1818, 0.0
    %v1948 = vadd.f32 %v1946, %v1947
    %v1949 = vsel %vm288, %v1819, 0.0
    %v1950 = vadd.f32 %v1948, %v1949
    %v1951 = vsel %vm288, %v1820, 0.0
    %v1952 = vadd.f32 %v1950, %v1951
    %v1953 = vsel %vm288, %v1821, 0.0
    %v1954 = vsel %vm288, %v1822, 0.0
    %v1955 = vadd.f32 %v1953, %v1954
    %v1956 = vsel %vm288, %v1823, 0.0
    %v1957 = vadd.f32 %v1955, %v1956
    %v1958 = vsel %vm288, %v1824, 0.0
    %v1959 = vadd.f32 %v1957, %v1958
    %v1960 = vsel %vm288, %v1825, 0.0
    %v1961 = vadd.f32 %v1959, %v1960
    %v1962 = vsel %vm288, %v1826, 0.0
    %v1963 = vsel %vm288, %v1827, 0.0
    %v1964 = vadd.f32 %v1962, %v1963
    %v1965 = vsel %vm288, %v1828, 0.0
    %v1966 = vadd.f32 %v1964, %v1965
    %v1967 = vsel %vm288, %v1829, 0.0
    %v1968 = vadd.f32 %v1966, %v1967
    %v1969 = vsel %vm288, %v1830, 0.0
    %v1970 = vadd.f32 %v1968, %v1969
    %v1971 = vsel %vm288, %v1831, 0.0
    %v1972 = vsel %vm288, %v1832, 0.0
    %v1973 = vadd.f32 %v1971, %v1972
    %v1974 = vsel %vm288, %v1833, 0.0
    %v1975 = vadd.f32 %v1973, %v1974
    %v1976 = vsel %vm288, %v1834, 0.0
    %v1977 = vadd.f32 %v1975, %v1976
    %v1978 = vsel %vm288, %v1835, 0.0
    %v1979 = vadd.f32 %v1977, %v1978
    %v1980 = vsel %vm288, %v1844, 0.0
    %1981 = vadd.xlane.f32.xlu0 %v1980
    %v1982 = vpop.xlane.xlu0 %1981
    %v1983 = vsel %vm288, %v1853, 0.0
    %1984 = vadd.xlane.f32.xlu0 %v1983
    %v1985 = vpop.xlane.xlu0 %1984
    %v1986 = vsel %vm288, %v1862, 0.0
    %1987 = vadd.xlane.f32.xlu0 %v1986
    %v1988 = vpop.xlane.xlu0 %1987
    %v1989 = vsel %vm288, %v1871, 0.0
    %1990 = vadd.xlane.f32.xlu0 %v1989
    %v1991 = vpop.xlane.xlu0 %1990
    %v1992 = vsel %vm288, %v1880, 0.0
    %1993 = vadd.xlane.f32.xlu0 %v1992
    %v1994 = vpop.xlane.xlu0 %1993
    %v1995 = vsel %vm288, %v1889, 0.0
    %1996 = vadd.xlane.f32.xlu0 %v1995
    %v1997 = vpop.xlane.xlu0 %1996
    %v1998 = vsel %vm288, %v1898, 0.0
    %1999 = vadd.xlane.f32.xlu0 %v1998
    %v2000 = vpop.xlane.xlu0 %1999
    %v2001 = vsel %vm288, %v1907, 0.0
    %2002 = vadd.xlane.f32.xlu0 %v2001
    %v2003 = vpop.xlane.xlu0 %2002
    %v2004 = vsel %vm288, %v1916, 0.0
    %2005 = vadd.xlane.f32.xlu0 %v2004
    %v2006 = vpop.xlane.xlu0 %2005
    %v2007 = vsel %vm288, %v1925, 0.0
    %2008 = vadd.xlane.f32.xlu0 %v2007
    %v2009 = vpop.xlane.xlu0 %2008
    %v2010 = vsel %vm288, %v1934, 0.0
    %2011 = vadd.xlane.f32.xlu0 %v2010
    %v2012 = vpop.xlane.xlu0 %2011
    %v2013 = vsel %vm288, %v1943, 0.0
    %2014 = vadd.xlane.f32.xlu0 %v2013
    %v2015 = vpop.xlane.xlu0 %2014
    %v2016 = vsel %vm288, %v1952, 0.0
    %2017 = vadd.xlane.f32.xlu0 %v2016
    %v2018 = vpop.xlane.xlu0 %2017
    %v2019 = vsel %vm288, %v1961, 0.0
    %2020 = vadd.xlane.f32.xlu0 %v2019
    %v2021 = vpop.xlane.xlu0 %2020
    %v2022 = vsel %vm288, %v1970, 0.0
    %2023 = vadd.xlane.f32.xlu0 %v2022
    %v2024 = vpop.xlane.xlu0 %2023
    %v2025 = vsel %vm288, %v1979, 0.0
    %2026 = vadd.xlane.f32.xlu0 %v2025
    %v2027 = vpop.xlane.xlu0 %2026
    %v2044 = vlaneseq
    %v2045 = vand.u32 %v2044, 127
    %v2046 = vlaneseq
    %v2047 = vshrl.u32 %v2046, 7
    %v2048 = vsub.s32 %v2045, %v2047
    %v2049 = vrot.slane %v1982, %v2048
    %v2050 = vlaneseq
    %v2051 = vshrl.u32 %v2050, 7
    %v2052 = vsub.s32 %v2045, %v2051
    %v2053 = vrot.slane %v1985, %v2052
    %v2054 = vlaneseq
    %v2055 = vshrl.u32 %v2054, 7
    %v2056 = vsub.s32 %v2045, %v2055
    %v2057 = vrot.slane %v1988, %v2056
    %v2058 = vlaneseq
    %v2059 = vshrl.u32 %v2058, 7
    %v2060 = vsub.s32 %v2045, %v2059
    %v2061 = vrot.slane %v1991, %v2060
    %v2062 = vlaneseq
    %v2063 = vshrl.u32 %v2062, 7
    %v2064 = vsub.s32 %v2045, %v2063
    %v2065 = vrot.slane %v1994, %v2064
    %v2066 = vlaneseq
    %v2067 = vshrl.u32 %v2066, 7
    %v2068 = vsub.s32 %v2045, %v2067
    %v2069 = vrot.slane %v1997, %v2068
    %v2070 = vlaneseq
    %v2071 = vshrl.u32 %v2070, 7
    %v2072 = vsub.s32 %v2045, %v2071
    %v2073 = vrot.slane %v2000, %v2072
    %v2074 = vlaneseq
    %v2075 = vshrl.u32 %v2074, 7
    %v2076 = vsub.s32 %v2045, %v2075
    %v2077 = vrot.slane %v2003, %v2076
    %v2078 = vlaneseq
    %v2079 = vshrl.u32 %v2078, 7
    %v2080 = vsub.s32 %v2045, %v2079
    %v2081 = vrot.slane %v2006, %v2080
    %v2082 = vlaneseq
    %v2083 = vshrl.u32 %v2082, 7
    %v2084 = vsub.s32 %v2045, %v2083
    %v2085 = vrot.slane %v2009, %v2084
    %v2086 = vlaneseq
    %v2087 = vshrl.u32 %v2086, 7
    %v2088 = vsub.s32 %v2045, %v2087
    %v2089 = vrot.slane %v2012, %v2088
    %v2090 = vlaneseq
    %v2091 = vshrl.u32 %v2090, 7
    %v2092 = vsub.s32 %v2045, %v2091
    %v2093 = vrot.slane %v2015, %v2092
    %v2094 = vlaneseq
    %v2095 = vshrl.u32 %v2094, 7
    %v2096 = vsub.s32 %v2045, %v2095
    %v2097 = vrot.slane %v2018, %v2096
    %v2098 = vlaneseq
    %v2099 = vshrl.u32 %v2098, 7
    %v2100 = vsub.s32 %v2045, %v2099
    %v2101 = vrot.slane %v2021, %v2100
    %v2102 = vlaneseq
    %v2103 = vshrl.u32 %v2102, 7
    %v2104 = vsub.s32 %v2045, %v2103
    %v2105 = vrot.slane %v2024, %v2104
    %v2106 = vlaneseq
    %v2107 = vshrl.u32 %v2106, 7
    %v2108 = vsub.s32 %v2045, %v2107
    %v2109 = vrot.slane %v2027, %v2108
    %vm2110 = vcmask 1041409
    %v2111 = vsel %vm2110, %v2053, %v2049
    %vm2112 = vcmask 1042434
    %v2113 = vsel %vm2112, %v2057, %v2111
    %vm2114 = vcmask 1043459
    %v2115 = vsel %vm2114, %v2061, %v2113
    %vm2116 = vcmask 1044484
    %v2117 = vsel %vm2116, %v2065, %v2115
    %vm2118 = vcmask 1045509
    %v2119 = vsel %vm2118, %v2069, %v2117
    %vm2120 = vcmask 1046534
    %v2121 = vsel %vm2120, %v2073, %v2119
    %vm2122 = vcmask 1047559
    %v2123 = vsel %vm2122, %v2077, %v2121
    %v2124 = vsel %vm2110, %v2085, %v2081
    %v2125 = vsel %vm2112, %v2089, %v2124
    %v2126 = vsel %vm2114, %v2093, %v2125
    %v2127 = vsel %vm2116, %v2097, %v2126
    %v2128 = vsel %vm2118, %v2101, %v2127
    %v2129 = vsel %vm2120, %v2105, %v2128
    %v2130 = vsel %vm2122, %v2109, %v2129
    %vm2133 = vcmask 64512
    %v2134 = vsel %vm2133, %v2123, 0.0
    %2135 = vadd.xlane.f32.xlu0 %v2134
    %v2136 = vpop.xlane.xlu0 %2135
    %v2137 = vsel %vm2133, %v2130, 0.0
    %2138 = vadd.xlane.f32.xlu0 %v2137
    %v2139 = vpop.xlane.xlu0 %2138
    %v2140 = vld [vmem:[#allocation25] sm:$0x1]
    %v2142 = vlaneseq
    %v2143 = vshrl.u32 %v2142, 7
    %v2144 = vsub.s32 0, %v2143
    %v2145 = vrot.slane %v2140, %v2144
    %2147 = vbcast.lane.b32.xlu0 %v2145, 256
    %v2148 = vpop.permute.xlu0 %2147
    %v2150 = vadd.f32 %v2136, %v2148
    %v2151 = vadd.f32 %v2139, %v2148
    %2154 = vset.pattern.permute.xlu0 0
    %2155 = vperm.xlu0 %2154, %v2150
    %v2156 = vpop.permute.xlu0 %2155
    %2157 = vset.pattern.permute.xlu0 0
    %2158 = vperm.xlu0 %2157, %v2151
    %v2159 = vpop.permute.xlu0 %2158
    %v2160 = vlaneseq
    %v2161 = vshrl.u32 %v2160, 7
    %v2162 = vsub.s32 %v2045, %v2161
    %v2163 = vrot.slane %v2156, %v2162
    %v2164 = vlaneseq
    %v2165 = vshrl.u32 %v2164, 7
    %v2166 = vsub.s32 %v2045, %v2165
    %v2167 = vrot.slane %v2159, %v2166
    %v2168 = vsel %vm2110, %v2167, %v2163
    %vm2170 = vcmask 58368
    %2171 = vst.msk [vmem:[#allocation26] sm:$0x3] %vm2170, %v2168
    // Predicated region
    $region138: #{forward.1} parent=1 // pred_check
      _
    $region139: #{forward.1} parent=1 // pred_check_branch
      %2173 = sbr.rel (0) target = $region141
    $region140: #{forward.1} parent=1 // pred_region
      %s2175 = ssub.s32 32, 32
      %2176 = vsyncadd [#allocation4], %s2175
      %s2178 = sshll.u32 [#allocation26], 4
      %s2179 = int_to_ptr.vmem [resolvable:$true] %s2178
      %2181 = dma.vmem_to_hbm [thread:$0]  %s2179, 32, %s19, [#allocation4]
    $region141: #{forward.1} parent=1 // pred_fallthru
      _
    // Predicated region
    $region142: #{forward.1} parent=1 // pred_check
      _
    $region143: #{forward.1} parent=1 // pred_check_branch
      %2183 = sbr.rel (0) target = $region145
    $region144: #{forward.1} parent=1 // pred_region
      %2184 = dma.done [#allocation4], 32
    $region145: #{forward.1} parent=1 // pred_fallthru
      _
    %2185 = vsyncpa [#allocation3], 1
    %2186 = vsyncpa [#allocation6], 1
    %2187 = vsyncpa [#allocation9], 1
    %2188 = vsyncpa [#allocation12], 1
    %2189 = vsyncpa [#allocation15], 1
    %2190 = vsyncpa [#allocation18], 1
    %2191 = vsyncpa [#allocation21], 1
    %2192 = vsyncpa [#allocation24], 1
    %2193 = vsyncpa [#allocation4], 1

</llo_original>
